<compile_context>
chip_gen: v7x
topology: tpu7x:2x2x1
jax: 0.10.0
libtpu: 0.0.40
codegen_flags: <defaults>
</compile_context>

<pallas_src>
import jax
import jax.numpy as jnp
from jax import lax
from jax.experimental import pallas as pl
from jax.experimental.pallas import tpu as pltpu


# ---------------------------------------------------------------------------
# Fused kernel: ConvTranspose(1x4, s=(1,2), p=(0,1)) + BN(+bias) + ReLU
# ---------------------------------------------------------------------------
def _upsample_kernel(x_ref, w_ref, sc_ref, sh_ref, o_ref):
    """x_ref : (1, TH, W, Cin)    bf16 activations (height tile, no halo needed)
       w_ref : (3*Cin, 2*Cout)    bf16 packed taps; row blocks = [x_prev | x | x_next],
                                  col blocks = [even outputs | odd outputs]
       sc_ref: (1, 2*Cout)        f32 folded-BN scale (tiled twice)
       sh_ref: (1, 2*Cout)        f32 folded-BN shift + folded conv bias (tiled twice)
       o_ref : (1, TH, W, 2*Cout) f32; channel j<Cout -> out column 2w, j>=Cout -> 2w+1
    """
    _, TH, W, Cin = x_ref.shape
    Cout2 = o_ref.shape[-1]

    x = x_ref[0]                                              # (TH, W, Cin) bf16
    zc = jnp.zeros((TH, 1, Cin), x.dtype)
    x_prev = jnp.concatenate([zc, x[:, :W - 1, :]], axis=1)   # x[m-1], zero at m=0
    x_next = jnp.concatenate([x[:, 1:, :], zc], axis=1)       # x[m+1], zero at m=W-1
    x3 = jnp.concatenate([x_prev, x, x_next], axis=-1)        # (TH, W, 3*Cin)

    y = jnp.dot(x3.reshape(TH * W, 3 * Cin), w_ref[...],
                preferred_element_type=jnp.float32)           # (TH*W, 2*Cout) f32
    y = jnp.maximum(y * sc_ref[...] + sh_ref[...], 0.0)
    o_ref[0] = y.reshape(TH, W, Cout2).astype(o_ref.dtype)


def _pick_h_tile(H):
    for th in (64, 32, 16, 8):
        if H % th == 0:
            return th
    return H


def upsample_pallas(x_nhwc, w_big, scale2, shift2):
    """x_nhwc: (N,H,W,Cin) bf16; w_big: (3*Cin, 2*Cout) bf16. Returns (N,H,W,2*Cout) f32."""
    N, H, W, Cin = x_nhwc.shape
    Cout2 = w_big.shape[-1]
    th = _pick_h_tile(H)
    return pl.pallas_call(
        _upsample_kernel,
        out_shape=jax.ShapeDtypeStruct((N, H, W, Cout2), jnp.float32),
        grid=(N, H // th),
        in_specs=[
            pl.BlockSpec((1, th, W, Cin), lambda n, h: (n, h, 0, 0)),
            pl.BlockSpec((3 * Cin, Cout2), lambda n, h: (0, 0)),
            pl.BlockSpec((1, Cout2), lambda n, h: (0, 0)),
            pl.BlockSpec((1, Cout2), lambda n, h: (0, 0)),
        ],
        out_specs=pl.BlockSpec((1, th, W, Cout2), lambda n, h: (n, h, 0, 0)),
        compiler_params=pltpu.CompilerParams(
            dimension_semantics=("parallel", "parallel"),
            vmem_limit_bytes=32 * 1024 * 1024),
    )(x_nhwc, w_big, scale2, shift2)


# ---------------------------------------------------------------------------
# Parameter setup / weight packing / BN folding
# ---------------------------------------------------------------------------
def fold_bn(gamma, beta, mean, var, eps=1e-5):
    scale = gamma / jnp.sqrt(var + eps)
    shift = beta - mean * scale
    return scale.astype(jnp.float32), shift.astype(jnp.float32)


def build_w_big(wt):
    """wt: (4, Cin, Cout) ConvTranspose taps (torch kw order) -> packed (3*Cin, 2*Cout).
       even col 2m   = x[m]@wt[1] + x[m-1]@wt[3]
       odd  col 2m+1 = x[m+1]@wt[0] + x[m]@wt[2]
    """
    _, Cin, Cout = wt.shape
    z = jnp.zeros((Cin, Cout), wt.dtype)
    even_col = jnp.concatenate([wt[3], wt[1], z], axis=0)     # rows: x_prev, x, x_next
    odd_col = jnp.concatenate([z, wt[2], wt[0]], axis=0)
    return jnp.concatenate([even_col, odd_col], axis=1).astype(jnp.bfloat16)


def init_params(key, c_in, c_out):
    ks = jax.random.split(key, 6)
    # torch ConvTranspose2d weight is (Cin, Cout, 1, 4); stored here kw-major as (4, Cin, Cout)
    wt = 0.1 * jax.random.normal(ks[0], (4, c_in, c_out), jnp.float32)
    bt = 0.1 * jax.random.normal(ks[1], (c_out,), jnp.float32)
    gamma = 1.0 + 0.1 * jax.random.normal(ks[2], (c_out,), jnp.float32)
    beta = 0.1 * jax.random.normal(ks[3], (c_out,), jnp.float32)
    mean = 0.1 * jax.random.normal(ks[4], (c_out,), jnp.float32)
    var = 0.5 + 0.1 * jnp.abs(jax.random.normal(ks[5], (c_out,), jnp.float32))
    return {"wt": wt, "bt": bt, "bn": (gamma, beta, mean, var)}


def upsample_forward(x_nchw, p):
    """Pallas forward. Input/output NCHW (PyTorch convention)."""
    N, _, H, W = x_nchw.shape
    Cout = p["bt"].shape[0]
    scale, shift = fold_bn(*p["bn"])
    shift = scale * p["bt"] + shift                            # fold conv bias into BN shift
    x = jnp.transpose(x_nchw, (0, 2, 3, 1)).astype(jnp.bfloat16)   # NHWC, bf16
    w_big = build_w_big(p["wt"])
    scale2 = jnp.concatenate([scale, scale]).reshape(1, -1)
    shift2 = jnp.concatenate([shift, shift]).reshape(1, -1)
    y = upsample_pallas(x, w_big, scale2, shift2)              # (N, H, W, 2*Cout)
    y = y.reshape(N, H, 2 * W, Cout)                           # free row-major interleave
    return jnp.transpose(y, (0, 3, 1, 2))                      # -> NCHW


# ---------------------------------------------------------------------------
# Pure-JAX reference (lax dilated conv) for verification
# ---------------------------------------------------------------------------
def upsample_ref(x_nchw, p):
    x = jnp.transpose(x_nchw, (0, 2, 3, 1))
    # match the kernel's bf16 input/weight rounding, compute in f32
    x = x.astype(jnp.bfloat16).astype(jnp.float32)
    wt = p["wt"].astype(jnp.bfloat16).astype(jnp.float32)
    dn = ("NHWC", "HWIO", "NHWC")
    # ConvTranspose2d(k=(1,4), s=(1,2), p=(0,1)) == lhs-dilated conv with flipped kernel
    w_hwio = jnp.flip(wt, axis=0)[None]                        # (1,4,Cin,Cout)
    up = lax.conv_general_dilated(x, w_hwio, (1, 1),
                                  padding=((0, 0), (2, 2)),
                                  lhs_dilation=(1, 2),
                                  dimension_numbers=dn,
                                  precision=lax.Precision.HIGHEST) + p["bt"]
    scale, shift = fold_bn(*p["bn"])
    y = jnp.maximum(up * scale + shift, 0.0)
    return jnp.transpose(y, (0, 3, 1, 2))


if __name__ == "__main__":
    N, C_IN, C_OUT, H, W = 2, 8, 4, 16, 32

    key = jax.random.PRNGKey(0)
    kx, kp = jax.random.split(key)
    x = jax.random.normal(kx, (N, C_IN, H, W), jnp.float32)
    params = init_params(kp, C_IN, C_OUT)

    out = jax.block_until_ready(jax.jit(upsample_forward)(x, params))
    ref = jax.block_until_ready(upsample_ref(x, params))

    assert out.shape == (N, C_OUT, H, 2 * W), out.shape
    err = float(jnp.max(jnp.abs(out - ref)))
    assert err < 5e-3, err
    print("KERNEL_OK")
</pallas_src>

<mosaic_0001>
module attributes {stable_mosaic.version = 11 : i64} {
  func.func @_upsample_kernel(%arg0: i32, %arg1: i32, %arg2: memref<1x16x32x8xbf16, #tpu.memory_space<vmem>>, %arg3: memref<24x8xbf16, #tpu.memory_space<vmem>>, %arg4: memref<1x8xf32, #tpu.memory_space<vmem>>, %arg5: memref<1x8xf32, #tpu.memory_space<vmem>>, %arg6: memref<1x16x32x8xf32, #tpu.memory_space<vmem>>) attributes {dimension_semantics = [#tpu.dimension_semantics<parallel>, #tpu.dimension_semantics<parallel>], iteration_bounds = array<i64: 2, 1>, scalar_prefetch = 0 : i64, scratch_operands = 0 : i64, tpu.core_type = #tpu.core_type<tc>, window_params = [{transform_indices = @transform_0, window_bounds = array<i64: 1, 16, 32, 8>}, {pipeline_mode = #tpu.pipeline_mode<synchronous>, transform_indices = @transform_1, window_bounds = array<i64: 24, 8>}, {pipeline_mode = #tpu.pipeline_mode<synchronous>, transform_indices = @transform_2, window_bounds = array<i64: 1, 8>}, {pipeline_mode = #tpu.pipeline_mode<synchronous>, transform_indices = @transform_3, window_bounds = array<i64: 1, 8>}, {transform_indices = @transform_4, window_bounds = array<i64: 1, 16, 32, 8>}]} {
    %c0 = arith.constant 0 : index
    %c0_0 = arith.constant 0 : index
    %c0_1 = arith.constant 0 : index
    %c0_2 = arith.constant 0 : index
    %0 = vector.load %arg2[%c0, %c0_0, %c0_1, %c0_2] : memref<1x16x32x8xbf16, #tpu.memory_space<vmem>>, vector<1x16x32x8xbf16>
    %1 = vector.shape_cast %0 : vector<1x16x32x8xbf16> to vector<16x32x8xbf16>
    %cst = arith.constant 0.000000e+00 : bf16
    %2 = vector.broadcast %cst : bf16 to vector<16x1x8xbf16>
    %3 = vector.extract_strided_slice %1 {offsets = [0, 0, 0], sizes = [16, 31, 8], strides = [1, 1, 1]} : vector<16x32x8xbf16> to vector<16x31x8xbf16>
    %4 = tpu.concatenate %2, %3 in 1 : vector<16x1x8xbf16>, vector<16x31x8xbf16> -> vector<16x32x8xbf16>
    %5 = vector.extract_strided_slice %1 {offsets = [0, 1, 0], sizes = [16, 31, 8], strides = [1, 1, 1]} : vector<16x32x8xbf16> to vector<16x31x8xbf16>
    %6 = tpu.concatenate %5, %2 in 1 : vector<16x31x8xbf16>, vector<16x1x8xbf16> -> vector<16x32x8xbf16>
    %7 = tpu.concatenate %4, %1, %6 in 2 : vector<16x32x8xbf16>, vector<16x32x8xbf16>, vector<16x32x8xbf16> -> vector<16x32x24xbf16>
    %8 = vector.shape_cast %7 : vector<16x32x24xbf16> to vector<512x24xbf16>
    %c0_3 = arith.constant 0 : index
    %c0_4 = arith.constant 0 : index
    %9 = vector.load %arg3[%c0_3, %c0_4] : memref<24x8xbf16, #tpu.memory_space<vmem>>, vector<24x8xbf16>
    %cst_5 = arith.constant dense<0.000000e+00> : vector<512x8xf32>
    %10 = tpu.matmul %8, %9, %cst_5 {dimension_numbers = #tpu.dot_dimension_numbers<[1], [0], [0], [1], [0, 0, 1, 1], [], []>} : vector<512x24xbf16>, vector<24x8xbf16>, vector<512x8xf32> -> vector<512x8xf32>
    %c0_6 = arith.constant 0 : index
    %c0_7 = arith.constant 0 : index
    %11 = vector.load %arg4[%c0_6, %c0_7] : memref<1x8xf32, #tpu.memory_space<vmem>>, vector<1x8xf32>
    %12 = vector.broadcast %11 : vector<1x8xf32> to vector<512x8xf32>
    %13 = arith.mulf %10, %12 : vector<512x8xf32>
    %c0_8 = arith.constant 0 : index
    %c0_9 = arith.constant 0 : index
    %14 = vector.load %arg5[%c0_8, %c0_9] : memref<1x8xf32, #tpu.memory_space<vmem>>, vector<1x8xf32>
    %15 = vector.broadcast %14 : vector<1x8xf32> to vector<512x8xf32>
    %16 = arith.addf %13, %15 : vector<512x8xf32>
    %cst_10 = arith.constant 0.000000e+00 : f32
    %17 = vector.broadcast %cst_10 : f32 to vector<512x8xf32>
    %18 = arith.maximumf %16, %17 : vector<512x8xf32>
    %19 = vector.shape_cast %18 : vector<512x8xf32> to vector<16x32x8xf32>
    %c0_11 = arith.constant 0 : index
    %c0_12 = arith.constant 0 : index
    %c0_13 = arith.constant 0 : index
    %c0_14 = arith.constant 0 : index
    %20 = vector.load %arg6[%c0_11, %c0_12, %c0_13, %c0_14] : memref<1x16x32x8xf32, #tpu.memory_space<vmem>>, vector<1x16x32x8xf32>
    %21 = vector.shape_cast %20 : vector<1x16x32x8xf32> to vector<16x32x8xf32>
    %22 = vector.shape_cast %19 : vector<16x32x8xf32> to vector<1x16x32x8xf32>
    tpu.vector_store %arg6[%c0_11, %c0_12, %c0_13, %c0_14], %22 {strides = array<i32>} : memref<1x16x32x8xf32, #tpu.memory_space<vmem>>, vector<1x16x32x8xf32>,
    return
  }
  func.func @transform_0(%arg0: i32, %arg1: i32) -> (i32, i32, i32, i32) {
    %c0_i32 = arith.constant 0 : i32
    %c0_i32_0 = arith.constant 0 : i32
    %c0_i32_1 = arith.constant 0 : i32
    return %arg0, %arg1, %c0_i32, %c0_i32_0 : i32, i32, i32, i32
  }
  func.func @transform_1(%arg0: i32, %arg1: i32) -> (i32, i32) {
    %c0_i32 = arith.constant 0 : i32
    %c0_i32_0 = arith.constant 0 : i32
    %c0_i32_1 = arith.constant 0 : i32
    return %c0_i32, %c0_i32_0 : i32, i32
  }
  func.func @transform_2(%arg0: i32, %arg1: i32) -> (i32, i32) {
    %c0_i32 = arith.constant 0 : i32
    %c0_i32_0 = arith.constant 0 : i32
    %c0_i32_1 = arith.constant 0 : i32
    return %c0_i32, %c0_i32_0 : i32, i32
  }
  func.func @transform_3(%arg0: i32, %arg1: i32) -> (i32, i32) {
    %c0_i32 = arith.constant 0 : i32
    %c0_i32_0 = arith.constant 0 : i32
    %c0_i32_1 = arith.constant 0 : i32
    return %c0_i32, %c0_i32_0 : i32, i32
  }
  func.func @transform_4(%arg0: i32, %arg1: i32) -> (i32, i32, i32, i32) {
    %c0_i32 = arith.constant 0 : i32
    %c0_i32_0 = arith.constant 0 : i32
    %c0_i32_1 = arith.constant 0 : i32
    return %arg0, %arg1, %c0_i32, %c0_i32_0 : i32, i32, i32, i32
  }
}

</mosaic_0001>

<llo_original>
// kernel: upsample_forward.1
$region0: #{upsample_forward.1}
  #allocation0 [shape = 'u32[]', space=smem, size = 0x4, offset = 0x4, fixed_abs, tag = 'smem constant byte address 0x4 - core index']
  #allocation1 [shape = 'u32[144,128]{1,0:T(1,128)}', space=vmem, size = 0x12000, scoped, tag = 'internal scratch']
  %s0 = inlined_call_operand.vmem [shape: bf16[2,16,32,8], index: 0, kind: input, shape index: {}]
  %s1 = inlined_call_operand.vmem [shape: bf16[24,8], index: 1, kind: input, shape index: {}]
  %s2 = inlined_call_operand.vmem [shape: f32[1,8], index: 2, kind: input, shape index: {}]
  %s3 = inlined_call_operand.vmem [shape: f32[1,8], index: 3, kind: input, shape index: {}]
  %s4 = inlined_call_operand.vmem [shape: f32[2,16,32,8], index: 4, kind: output, shape index: {}]
  %s5 = sld [smem:[#allocation0]]
  $region49: #{upsample_forward.1} parent=0
    _
  %s7 = ssub.s32 1, %s5
  %s8 = scalar_select 0, %s7, %s5
  loop: start=0, step=1, limit=4
  $region2: #{upsample_forward.1} parent=0 // loop_pre_header
    _
  $region3: #{upsample_forward.1} parent=0 // loop_header
    %s10 = sphi 0, %s14
    %p11 = scmp.ge.s32.totalorder %s10, 4
    %s17 = sphi 0, %s29
    %s18 = sphi 0, %s25
    %s19 = sphi 0, %s17
    %s20 = sphi 0, %s18
    %s21 = sphi 0, %s19
    %s22 = sphi 0, %s20
    %s34 = sphi 0, %s36
    %s37 = sphi 0, %s34
    %s38 = sphi 0, %s37
    %s54 = sphi 0, %s38
    %s58 = sphi 0, %s58
    %s60 = sphi 0, %s58
    %s61 = sphi 0, %s60
    %s75 = sphi 0, %s61
    %s79 = sphi 0, %s79
    %s81 = sphi 0, %s79
    %s82 = sphi 0, %s81
    %s96 = sphi 0, %s82
    %s100 = sphi 0, %s100
    %s102 = sphi 0, %s100
    %s103 = sphi 0, %s102
    %s117 = sphi 0, %s103
    %s125 = sphi 0, %s127
    %s128 = sphi 0, %s125
    %s129 = sphi 0, %s128
    %s145 = sphi 0, %s129
  $region4: #{upsample_forward.1} parent=0 // loop_header_branch
    %13 = sbr.rel (%p11) target = $region8
  $region5: #{upsample_forward.1} parent=0 // loop_body
    %s15 = ssub.s32 %s10, 1
    %s16 = ssub.s32 %s10, 2
    %s23 = sadd.s32 1, %s18
    %p24 = scmp.ge.s32.totalorder %s23, 1
    %s25 = scalar_select %p24, 0, %s23
    %s26 = sadd.s32 1, %s17
    %s27 = scalar_select %p24, %s26, %s17
    %p28 = scmp.ge.s32.totalorder %s27, 2
    %s29 = scalar_select %p28, 0, %s27
    %s30 = ssub.s32 %s17, %s29
    %s31 = ssub.s32 %s18, %s25
    %s32 = sor.u32 %s30, %s31
    %p33 = scmp.eq.s32.totalorder %s32, 0
    %s35 = sadd.s32 %s34, 1
    %s36 = scalar_select %p33, %s34, %s35
    %p39 = pneg %p33
    %p40 = scmp.eq.s32.totalorder %s10, 1
    %p41 = por %p39, %p40
    %p42 = scmp.ne.s32.totalorder %s34, %s37
    %p43 = scmp.eq.s32.totalorder %s10, 0
    %p44 = por %p42, %p43
    %p45 = scmp.ne.s32.totalorder %s34, %s37
    %p46 = scmp.eq.s32.totalorder %s15, 1
    %p47 = por %p45, %p46
    %p48 = scmp.ne.s32.totalorder %s37, %s38
    %p49 = scmp.eq.s32.totalorder %s15, 0
    %p50 = por %p48, %p49
    %p51 = scmp.ne.s32.totalorder %s37, %s38
    %p52 = scmp.eq.s32.totalorder %s16, 1
    %p53 = por %p51, %p52
    %p55 = scmp.ne.s32.totalorder %s38, %s54
    %p56 = scmp.eq.s32.totalorder %s16, 0
    %p57 = por %p55, %p56
    %s59 = sadd.s32 %s58, 1
    %p62 = scmp.eq.s32.totalorder %s10, 1
    %p63 = scmp.ne.s32.totalorder %s58, %s60
    %p64 = scmp.eq.s32.totalorder %s10, 0
    %p65 = por %p63, %p64
    %p66 = scmp.ne.s32.totalorder %s58, %s60
    %p67 = scmp.eq.s32.totalorder %s15, 1
    %p68 = por %p66, %p67
    %p69 = scmp.ne.s32.totalorder %s60, %s61
    %p70 = scmp.eq.s32.totalorder %s15, 0
    %p71 = por %p69, %p70
    %p72 = scmp.ne.s32.totalorder %s60, %s61
    %p73 = scmp.eq.s32.totalorder %s16, 1
    %p74 = por %p72, %p73
    %p76 = scmp.ne.s32.totalorder %s61, %s75
    %p77 = scmp.eq.s32.totalorder %s16, 0
    %p78 = por %p76, %p77
    %s80 = sadd.s32 %s79, 1
    %p83 = scmp.eq.s32.totalorder %s10, 1
    %p84 = scmp.ne.s32.totalorder %s79, %s81
    %p85 = scmp.eq.s32.totalorder %s10, 0
    %p86 = por %p84, %p85
    %p87 = scmp.ne.s32.totalorder %s79, %s81
    %p88 = scmp.eq.s32.totalorder %s15, 1
    %p89 = por %p87, %p88
    %p90 = scmp.ne.s32.totalorder %s81, %s82
    %p91 = scmp.eq.s32.totalorder %s15, 0
    %p92 = por %p90, %p91
    %p93 = scmp.ne.s32.totalorder %s81, %s82
    %p94 = scmp.eq.s32.totalorder %s16, 1
    %p95 = por %p93, %p94
    %p97 = scmp.ne.s32.totalorder %s82, %s96
    %p98 = scmp.eq.s32.totalorder %s16, 0
    %p99 = por %p97, %p98
    %s101 = sadd.s32 %s100, 1
    %p104 = scmp.eq.s32.totalorder %s10, 1
    %p105 = scmp.ne.s32.totalorder %s100, %s102
    %p106 = scmp.eq.s32.totalorder %s10, 0
    %p107 = por %p105, %p106
    %p108 = scmp.ne.s32.totalorder %s100, %s102
    %p109 = scmp.eq.s32.totalorder %s15, 1
    %p110 = por %p108, %p109
    %p111 = scmp.ne.s32.totalorder %s102, %s103
    %p112 = scmp.eq.s32.totalorder %s15, 0
    %p113 = por %p111, %p112
    %p114 = scmp.ne.s32.totalorder %s102, %s103
    %p115 = scmp.eq.s32.totalorder %s16, 1
    %p116 = por %p114, %p115
    %p118 = scmp.ne.s32.totalorder %s103, %s117
    %p119 = scmp.eq.s32.totalorder %s16, 0
    %p120 = por %p118, %p119
    %s121 = ssub.s32 %s17, %s29
    %s122 = ssub.s32 %s18, %s25
    %s123 = sor.u32 %s121, %s122
    %p124 = scmp.eq.s32.totalorder %s123, 0
    %s126 = sadd.s32 %s125, 1
    %s127 = scalar_select %p124, %s125, %s126
    %p130 = pneg %p124
    %p131 = scmp.eq.s32.totalorder %s10, 1
    %p132 = por %p130, %p131
    %p133 = scmp.ne.s32.totalorder %s125, %s128
    %p134 = scmp.eq.s32.totalorder %s10, 0
    %p135 = por %p133, %p134
    %p136 = scmp.ne.s32.totalorder %s125, %s128
    %p137 = scmp.eq.s32.totalorder %s15, 1
    %p138 = por %p136, %p137
    %p139 = scmp.ne.s32.totalorder %s128, %s129
    %p140 = scmp.eq.s32.totalorder %s15, 0
    %p141 = por %p139, %p140
    %p142 = scmp.ne.s32.totalorder %s128, %s129
    %p143 = scmp.eq.s32.totalorder %s16, 1
    %p144 = por %p142, %p143
    %p146 = scmp.ne.s32.totalorder %s129, %s145
    %p147 = scmp.eq.s32.totalorder %s16, 0
    %p148 = por %p146, %p147
    %p149 = scmp.le.s32.totalorder 1, %s10
    %p150 = scmp.lt.s32.totalorder %s10, 3
    %p151 = pnand %p149, %p150
    %p152 = pneg %p151
    // Predicated region
    $region9: #{upsample_forward.1} parent=5 // pred_check
      _
    $region10: #{upsample_forward.1} parent=5 // pred_check_branch
      %154 = sbr.rel (%p151) target = $region12
    $region11: #{upsample_forward.1} parent=5 // pred_region
      %s155 = ssub.s32 %s10, 1
      // Predicated region
      $region13: #{upsample_forward.1} parent=11 // pred_check
        %p156 = pneg %p71
      $region14: #{upsample_forward.1} parent=11 // pred_check_branch
        %158 = sbr.rel (%p156) target = $region16
      $region15: #{upsample_forward.1} parent=11 // pred_region
        _
      $region16: #{upsample_forward.1} parent=11 // pred_fallthru
        _
      // Predicated region
      $region17: #{upsample_forward.1} parent=11 // pred_check
        %p159 = pneg %p92
      $region18: #{upsample_forward.1} parent=11 // pred_check_branch
        %161 = sbr.rel (%p159) target = $region20
      $region19: #{upsample_forward.1} parent=11 // pred_region
        _
      $region20: #{upsample_forward.1} parent=11 // pred_fallthru
        _
      // Predicated region
      $region21: #{upsample_forward.1} parent=11 // pred_check
        %p162 = pneg %p113
      $region22: #{upsample_forward.1} parent=11 // pred_check_branch
        %164 = sbr.rel (%p162) target = $region24
      $region23: #{upsample_forward.1} parent=11 // pred_region
        _
      $region24: #{upsample_forward.1} parent=11 // pred_fallthru
        _
    $region12: #{upsample_forward.1} parent=5 // pred_fallthru
      _
    %p165 = scmp.lt.s32.totalorder %s10, 2
    // Predicated region
    $region25: #{upsample_forward.1} parent=5 // pred_check
      %p166 = pneg %p165
    $region26: #{upsample_forward.1} parent=5 // pred_check_branch
      %168 = sbr.rel (%p166) target = $region28
    $region27: #{upsample_forward.1} parent=5 // pred_region
      // Predicated region
      $region29: #{upsample_forward.1} parent=27 // pred_check
        %p169 = pneg %p44
      $region30: #{upsample_forward.1} parent=27 // pred_check_branch
        %171 = sbr.rel (%p169) target = $region32
      $region31: #{upsample_forward.1} parent=27 // pred_region
        %s172 = smul.u32 16, %s18
        %p173 = scmp.lt.s32.totalorder %s17, 1
        %s174 = scalar_select %p173, %s17, 1
        %p175 = scmp.lt.s32.totalorder %s172, 15
        %s176 = scalar_select %p175, %s172, 15
        %s177 = smul.addr %s176, 4
        %s178 = smul.addr %s174, 64
        %s179 = sadd.s32 %s177, %s178
        %s180 = smul.addr %s179, 4
        %s181 = scalar_lea.vmem %s0, %s180
        %s182 = smul.u32 16, %s18
      $region32: #{upsample_forward.1} parent=27 // pred_fallthru
        _
    $region28: #{upsample_forward.1} parent=5 // pred_fallthru
      _
    %p183 = scmp.le.s32.totalorder 1, %s10
    %p184 = scmp.lt.s32.totalorder %s10, 3
    %p185 = pnand %p183, %p184
    %p186 = pneg %p185
    // Predicated region
    $region33: #{upsample_forward.1} parent=5 // pred_check
      _
    $region34: #{upsample_forward.1} parent=5 // pred_check_branch
      %188 = sbr.rel (%p185) target = $region36
    $region35: #{upsample_forward.1} parent=5 // pred_region
      %s189 = ssub.s32 %s10, 1
      %s190 = smul.u32 16, %s20
      %p191 = scmp.lt.s32.totalorder %s19, 1
      %s192 = scalar_select %p191, %s19, 1
      %p193 = scmp.lt.s32.totalorder %s190, 15
      %s194 = scalar_select %p193, %s190, 15
      %s195 = smul.addr %s194, 4
      %s196 = smul.addr %s192, 64
      %s197 = sadd.s32 %s195, %s196
      %s198 = smul.addr %s197, 4
      %s199 = scalar_lea.vmem %s0, %s198
      %p200 = pneg %p50
      %p201 = pneg %p47
      %p202 = pneg %p71
      %p203 = pneg %p68
      %p204 = pneg %p92
      %p205 = pneg %p89
      %p206 = pneg %p113
      %p207 = pneg %p110
      %p208 = pneg %p141
      %p209 = pneg %p138
      %s210 = smul.u32 16, %s20
      %p211 = scmp.lt.s32.totalorder %s19, 1
      %s212 = scalar_select %p211, %s19, 1
      %p213 = scmp.lt.s32.totalorder %s210, 15
      %s214 = scalar_select %p213, %s210, 15
      %s215 = smul.addr %s214, 4
      %s216 = smul.addr %s212, 64
      %s217 = sadd.s32 %s215, %s216
      %s218 = smul.addr %s217, 8
      %s219 = scalar_lea.vmem %s4, %s218
      %s220 = smul.u32 16, %s20
      %p221 = scmp.lt.s32.totalorder %s19, 1
      %s222 = scalar_select %p221, %s19, 1
      %p223 = scmp.lt.s32.totalorder %s220, 15
      %s224 = scalar_select %p223, %s220, 15
      %s225 = smul.addr %s224, 4
      %s226 = smul.addr %s222, 64
      %s227 = sadd.s32 %s225, %s226
      %s228 = smul.addr %s227, 4
      %s229 = scalar_lea.vmem %s0, %s228
      %s230 = smul.u32 16, %s20
      %s231 = smul.u32 16, %s20
      %p232 = scmp.lt.s32.totalorder %s19, 1
      %s233 = scalar_select %p232, %s19, 1
      %p234 = scmp.lt.s32.totalorder %s231, 15
      %s235 = scalar_select %p234, %s231, 15
      %s236 = smul.addr %s235, 4
      %s237 = smul.addr %s233, 64
      %s238 = sadd.s32 %s236, %s237
      %s239 = smul.addr %s238, 8
      %s240 = scalar_lea.vmem %s4, %s239
      %s241 = smul.u32 16, %s20
      %v243 = vld [vmem:[%s229] sm:$0xf]
      %v244 = vld [vmem:[%s229 + $0x4] sm:$0xf]
      %v245 = vld [vmem:[%s229 + $0x8] sm:$0xf]
      %v246 = vld [vmem:[%s229 + $0xc] sm:$0xf]
      %v247 = vld [vmem:[%s229 + $0x10] sm:$0xf]
      %v248 = vld [vmem:[%s229 + $0x14] sm:$0xf]
      %v249 = vld [vmem:[%s229 + $0x18] sm:$0xf]
      %v250 = vld [vmem:[%s229 + $0x1c] sm:$0xf]
      %v251 = vld [vmem:[%s229 + $0x20] sm:$0xf]
      %v252 = vld [vmem:[%s229 + $0x24] sm:$0xf]
      %v253 = vld [vmem:[%s229 + $0x28] sm:$0xf]
      %v254 = vld [vmem:[%s229 + $0x2c] sm:$0xf]
      %v255 = vld [vmem:[%s229 + $0x30] sm:$0xf]
      %v256 = vld [vmem:[%s229 + $0x34] sm:$0xf]
      %v257 = vld [vmem:[%s229 + $0x38] sm:$0xf]
      %v258 = vld [vmem:[%s229 + $0x3c] sm:$0xf]
      %v259 = vld [vmem:[%s229 + $0x40] sm:$0xf]
      %v260 = vld [vmem:[%s229 + $0x44] sm:$0xf]
      %v261 = vld [vmem:[%s229 + $0x48] sm:$0xf]
      %v262 = vld [vmem:[%s229 + $0x4c] sm:$0xf]
      %v263 = vld [vmem:[%s229 + $0x50] sm:$0xf]
      %v264 = vld [vmem:[%s229 + $0x54] sm:$0xf]
      %v265 = vld [vmem:[%s229 + $0x58] sm:$0xf]
      %v266 = vld [vmem:[%s229 + $0x5c] sm:$0xf]
      %v267 = vld [vmem:[%s229 + $0x60] sm:$0xf]
      %v268 = vld [vmem:[%s229 + $0x64] sm:$0xf]
      %v269 = vld [vmem:[%s229 + $0x68] sm:$0xf]
      %v270 = vld [vmem:[%s229 + $0x6c] sm:$0xf]
      %v271 = vld [vmem:[%s229 + $0x70] sm:$0xf]
      %v272 = vld [vmem:[%s229 + $0x74] sm:$0xf]
      %v273 = vld [vmem:[%s229 + $0x78] sm:$0xf]
      %v274 = vld [vmem:[%s229 + $0x7c] sm:$0xf]
      %v275 = vld [vmem:[%s229 + $0x80] sm:$0xf]
      %v276 = vld [vmem:[%s229 + $0x84] sm:$0xf]
      %v277 = vld [vmem:[%s229 + $0x88] sm:$0xf]
      %v278 = vld [vmem:[%s229 + $0x8c] sm:$0xf]
      %v279 = vld [vmem:[%s229 + $0x90] sm:$0xf]
      %v280 = vld [vmem:[%s229 + $0x94] sm:$0xf]
      %v281 = vld [vmem:[%s229 + $0x98] sm:$0xf]
      %v282 = vld [vmem:[%s229 + $0x9c] sm:$0xf]
      %v283 = vld [vmem:[%s229 + $0xa0] sm:$0xf]
      %v284 = vld [vmem:[%s229 + $0xa4] sm:$0xf]
      %v285 = vld [vmem:[%s229 + $0xa8] sm:$0xf]
      %v286 = vld [vmem:[%s229 + $0xac] sm:$0xf]
      %v287 = vld [vmem:[%s229 + $0xb0] sm:$0xf]
      %v288 = vld [vmem:[%s229 + $0xb4] sm:$0xf]
      %v289 = vld [vmem:[%s229 + $0xb8] sm:$0xf]
      %v290 = vld [vmem:[%s229 + $0xbc] sm:$0xf]
      %v291 = vld [vmem:[%s229 + $0xc0] sm:$0xf]
      %v292 = vld [vmem:[%s229 + $0xc4] sm:$0xf]
      %v293 = vld [vmem:[%s229 + $0xc8] sm:$0xf]
      %v294 = vld [vmem:[%s229 + $0xcc] sm:$0xf]
      %v295 = vld [vmem:[%s229 + $0xd0] sm:$0xf]
      %v296 = vld [vmem:[%s229 + $0xd4] sm:$0xf]
      %v297 = vld [vmem:[%s229 + $0xd8] sm:$0xf]
      %v298 = vld [vmem:[%s229 + $0xdc] sm:$0xf]
      %v299 = vld [vmem:[%s229 + $0xe0] sm:$0xf]
      %v300 = vld [vmem:[%s229 + $0xe4] sm:$0xf]
      %v301 = vld [vmem:[%s229 + $0xe8] sm:$0xf]
      %v302 = vld [vmem:[%s229 + $0xec] sm:$0xf]
      %v303 = vld [vmem:[%s229 + $0xf0] sm:$0xf]
      %v304 = vld [vmem:[%s229 + $0xf4] sm:$0xf]
      %v305 = vld [vmem:[%s229 + $0xf8] sm:$0xf]
      %v306 = vld [vmem:[%s229 + $0xfc] sm:$0xf]
      %v371 = vunpack.c.l.b16 %v243
      %v372 = vunpack.c.l.b16 %v244
      %v373 = vunpack.c.l.b16 %v245
      %v374 = vunpack.c.l.b16 %v246
      %v375 = vunpack.c.l.b16 %v247
      %v376 = vunpack.c.l.b16 %v248
      %v377 = vunpack.c.l.b16 %v249
      %v378 = vunpack.c.l.b16 %v250
      %v379 = vunpack.c.l.b16 %v251
      %v380 = vunpack.c.l.b16 %v252
      %v381 = vunpack.c.l.b16 %v253
      %v382 = vunpack.c.l.b16 %v254
      %v383 = vunpack.c.l.b16 %v255
      %v384 = vunpack.c.l.b16 %v256
      %v385 = vunpack.c.l.b16 %v257
      %v386 = vunpack.c.l.b16 %v258
      %v387 = vunpack.c.l.b16 %v259
      %v388 = vunpack.c.l.b16 %v260
      %v389 = vunpack.c.l.b16 %v261
      %v390 = vunpack.c.l.b16 %v262
      %v391 = vunpack.c.l.b16 %v263
      %v392 = vunpack.c.l.b16 %v264
      %v393 = vunpack.c.l.b16 %v265
      %v394 = vunpack.c.l.b16 %v266
      %v395 = vunpack.c.l.b16 %v267
      %v396 = vunpack.c.l.b16 %v268
      %v397 = vunpack.c.l.b16 %v269
      %v398 = vunpack.c.l.b16 %v270
      %v399 = vunpack.c.l.b16 %v271
      %v400 = vunpack.c.l.b16 %v272
      %v401 = vunpack.c.l.b16 %v273
      %v402 = vunpack.c.l.b16 %v274
      %v403 = vunpack.c.l.b16 %v275
      %v404 = vunpack.c.l.b16 %v276
      %v405 = vunpack.c.l.b16 %v277
      %v406 = vunpack.c.l.b16 %v278
      %v407 = vunpack.c.l.b16 %v279
      %v408 = vunpack.c.l.b16 %v280
      %v409 = vunpack.c.l.b16 %v281
      %v410 = vunpack.c.l.b16 %v282
      %v411 = vunpack.c.l.b16 %v283
      %v412 = vunpack.c.l.b16 %v284
      %v413 = vunpack.c.l.b16 %v285
      %v414 = vunpack.c.l.b16 %v286
      %v415 = vunpack.c.l.b16 %v287
      %v416 = vunpack.c.l.b16 %v288
      %v417 = vunpack.c.l.b16 %v289
      %v418 = vunpack.c.l.b16 %v290
      %v419 = vunpack.c.l.b16 %v291
      %v420 = vunpack.c.l.b16 %v292
      %v421 = vunpack.c.l.b16 %v293
      %v422 = vunpack.c.l.b16 %v294
      %v423 = vunpack.c.l.b16 %v295
      %v424 = vunpack.c.l.b16 %v296
      %v425 = vunpack.c.l.b16 %v297
      %v426 = vunpack.c.l.b16 %v298
      %v427 = vunpack.c.l.b16 %v299
      %v428 = vunpack.c.l.b16 %v300
      %v429 = vunpack.c.l.b16 %v301
      %v430 = vunpack.c.l.b16 %v302
      %v431 = vunpack.c.l.b16 %v303
      %v432 = vunpack.c.l.b16 %v304
      %v433 = vunpack.c.l.b16 %v305
      %v434 = vunpack.c.l.b16 %v306
      %v435 = vpack.c.b16 %v372, %v371
      %v436 = vpack.c.b16 %v374, %v373
      %v437 = vpack.c.b16 %v376, %v375
      %v438 = vpack.c.b16 %v378, %v377
      %v439 = vpack.c.b16 %v380, %v379
      %v440 = vpack.c.b16 %v382, %v381
      %v441 = vpack.c.b16 %v384, %v383
      %v442 = vpack.c.b16 %v386, %v385
      %v443 = vpack.c.b16 %v388, %v387
      %v444 = vpack.c.b16 %v390, %v389
      %v445 = vpack.c.b16 %v392, %v391
      %v446 = vpack.c.b16 %v394, %v393
      %v447 = vpack.c.b16 %v396, %v395
      %v448 = vpack.c.b16 %v398, %v397
      %v449 = vpack.c.b16 %v400, %v399
      %v450 = vpack.c.b16 %v402, %v401
      %v451 = vpack.c.b16 %v404, %v403
      %v452 = vpack.c.b16 %v406, %v405
      %v453 = vpack.c.b16 %v408, %v407
      %v454 = vpack.c.b16 %v410, %v409
      %v455 = vpack.c.b16 %v412, %v411
      %v456 = vpack.c.b16 %v414, %v413
      %v457 = vpack.c.b16 %v416, %v415
      %v458 = vpack.c.b16 %v418, %v417
      %v459 = vpack.c.b16 %v420, %v419
      %v460 = vpack.c.b16 %v422, %v421
      %v461 = vpack.c.b16 %v424, %v423
      %v462 = vpack.c.b16 %v426, %v425
      %v463 = vpack.c.b16 %v428, %v427
      %v464 = vpack.c.b16 %v430, %v429
      %v465 = vpack.c.b16 %v432, %v431
      %v466 = vpack.c.b16 %v434, %v433
      %vm467 = vsmask.f32 256
      %v469 = vshrl.u32 %v435, 16
      %v471 = vrot.slane %v469, 7
      %v472 = vshll.u32 %v435, 16
      %v474 = vor.u32 %v471, %v472
      %v476 = vshrl.u32 %v436, 16
      %v478 = vrot.slane %v476, 7
      %v479 = vshll.u32 %v436, 16
      %v481 = vor.u32 %v478, %v479
      %v482 = vsel %vm467, %v471, %v481
      %v484 = vshrl.u32 %v437, 16
      %v486 = vrot.slane %v484, 7
      %v487 = vshll.u32 %v437, 16
      %v489 = vor.u32 %v486, %v487
      %v491 = vshrl.u32 %v438, 16
      %v493 = vrot.slane %v491, 7
      %v494 = vshll.u32 %v438, 16
      %v496 = vor.u32 %v493, %v494
      %v497 = vsel %vm467, %v486, %v496
      %v499 = vshrl.u32 %v439, 16
      %v501 = vrot.slane %v499, 7
      %v502 = vshll.u32 %v439, 16
      %v504 = vor.u32 %v501, %v502
      %v506 = vshrl.u32 %v440, 16
      %v508 = vrot.slane %v506, 7
      %v509 = vshll.u32 %v440, 16
      %v511 = vor.u32 %v508, %v509
      %v512 = vsel %vm467, %v501, %v511
      %v514 = vshrl.u32 %v441, 16
      %v516 = vrot.slane %v514, 7
      %v517 = vshll.u32 %v441, 16
      %v519 = vor.u32 %v516, %v517
      %v521 = vshrl.u32 %v442, 16
      %v523 = vrot.slane %v521, 7
      %v524 = vshll.u32 %v442, 16
      %v526 = vor.u32 %v523, %v524
      %v527 = vsel %vm467, %v516, %v526
      %v529 = vshrl.u32 %v443, 16
      %v531 = vrot.slane %v529, 7
      %v532 = vshll.u32 %v443, 16
      %v534 = vor.u32 %v531, %v532
      %v536 = vshrl.u32 %v444, 16
      %v538 = vrot.slane %v536, 7
      %v539 = vshll.u32 %v444, 16
      %v541 = vor.u32 %v538, %v539
      %v542 = vsel %vm467, %v531, %v541
      %v544 = vshrl.u32 %v445, 16
      %v546 = vrot.slane %v544, 7
      %v547 = vshll.u32 %v445, 16
      %v549 = vor.u32 %v546, %v547
      %v551 = vshrl.u32 %v446, 16
      %v553 = vrot.slane %v551, 7
      %v554 = vshll.u32 %v446, 16
      %v556 = vor.u32 %v553, %v554
      %v557 = vsel %vm467, %v546, %v556
      %v559 = vshrl.u32 %v447, 16
      %v561 = vrot.slane %v559, 7
      %v562 = vshll.u32 %v447, 16
      %v564 = vor.u32 %v561, %v562
      %v566 = vshrl.u32 %v448, 16
      %v568 = vrot.slane %v566, 7
      %v569 = vshll.u32 %v448, 16
      %v571 = vor.u32 %v568, %v569
      %v572 = vsel %vm467, %v561, %v571
      %v574 = vshrl.u32 %v449, 16
      %v576 = vrot.slane %v574, 7
      %v577 = vshll.u32 %v449, 16
      %v579 = vor.u32 %v576, %v577
      %v581 = vshrl.u32 %v450, 16
      %v583 = vrot.slane %v581, 7
      %v584 = vshll.u32 %v450, 16
      %v586 = vor.u32 %v583, %v584
      %v587 = vsel %vm467, %v576, %v586
      %v589 = vshrl.u32 %v451, 16
      %v591 = vrot.slane %v589, 7
      %v592 = vshll.u32 %v451, 16
      %v594 = vor.u32 %v591, %v592
      %v596 = vshrl.u32 %v452, 16
      %v598 = vrot.slane %v596, 7
      %v599 = vshll.u32 %v452, 16
      %v601 = vor.u32 %v598, %v599
      %v602 = vsel %vm467, %v591, %v601
      %v604 = vshrl.u32 %v453, 16
      %v606 = vrot.slane %v604, 7
      %v607 = vshll.u32 %v453, 16
      %v609 = vor.u32 %v606, %v607
      %v611 = vshrl.u32 %v454, 16
      %v613 = vrot.slane %v611, 7
      %v614 = vshll.u32 %v454, 16
      %v616 = vor.u32 %v613, %v614
      %v617 = vsel %vm467, %v606, %v616
      %v619 = vshrl.u32 %v455, 16
      %v621 = vrot.slane %v619, 7
      %v622 = vshll.u32 %v455, 16
      %v624 = vor.u32 %v621, %v622
      %v626 = vshrl.u32 %v456, 16
      %v628 = vrot.slane %v626, 7
      %v629 = vshll.u32 %v456, 16
      %v631 = vor.u32 %v628, %v629
      %v632 = vsel %vm467, %v621, %v631
      %v634 = vshrl.u32 %v457, 16
      %v636 = vrot.slane %v634, 7
      %v637 = vshll.u32 %v457, 16
      %v639 = vor.u32 %v636, %v637
      %v641 = vshrl.u32 %v458, 16
      %v643 = vrot.slane %v641, 7
      %v644 = vshll.u32 %v458, 16
      %v646 = vor.u32 %v643, %v644
      %v647 = vsel %vm467, %v636, %v646
      %v649 = vshrl.u32 %v459, 16
      %v651 = vrot.slane %v649, 7
      %v652 = vshll.u32 %v459, 16
      %v654 = vor.u32 %v651, %v652
      %v656 = vshrl.u32 %v460, 16
      %v658 = vrot.slane %v656, 7
      %v659 = vshll.u32 %v460, 16
      %v661 = vor.u32 %v658, %v659
      %v662 = vsel %vm467, %v651, %v661
      %v664 = vshrl.u32 %v461, 16
      %v666 = vrot.slane %v664, 7
      %v667 = vshll.u32 %v461, 16
      %v669 = vor.u32 %v666, %v667
      %v671 = vshrl.u32 %v462, 16
      %v673 = vrot.slane %v671, 7
      %v674 = vshll.u32 %v462, 16
      %v676 = vor.u32 %v673, %v674
      %v677 = vsel %vm467, %v666, %v676
      %v679 = vshrl.u32 %v463, 16
      %v681 = vrot.slane %v679, 7
      %v682 = vshll.u32 %v463, 16
      %v684 = vor.u32 %v681, %v682
      %v686 = vshrl.u32 %v464, 16
      %v688 = vrot.slane %v686, 7
      %v689 = vshll.u32 %v464, 16
      %v691 = vor.u32 %v688, %v689
      %v692 = vsel %vm467, %v681, %v691
      %v694 = vshrl.u32 %v465, 16
      %v696 = vrot.slane %v694, 7
      %v697 = vshll.u32 %v465, 16
      %v699 = vor.u32 %v696, %v697
      %v701 = vshrl.u32 %v466, 16
      %v703 = vrot.slane %v701, 7
      %v704 = vshll.u32 %v466, 16
      %v706 = vor.u32 %v703, %v704
      %v707 = vsel %vm467, %v696, %v706
      %vm724 = vcmask 1040384
      %vm725 = vmand %vm724, %vm467
      %v726 = vsel %vm725, 0, %v474
      %v727 = vsel %vm725, 0, %v489
      %v728 = vsel %vm725, 0, %v504
      %v729 = vsel %vm725, 0, %v519
      %v730 = vsel %vm725, 0, %v534
      %v731 = vsel %vm725, 0, %v549
      %v732 = vsel %vm725, 0, %v564
      %v733 = vsel %vm725, 0, %v579
      %v734 = vsel %vm725, 0, %v594
      %v735 = vsel %vm725, 0, %v609
      %v736 = vsel %vm725, 0, %v624
      %v737 = vsel %vm725, 0, %v639
      %v738 = vsel %vm725, 0, %v654
      %v739 = vsel %vm725, 0, %v669
      %v740 = vsel %vm725, 0, %v684
      %v741 = vsel %vm725, 0, %v699
      %vm742 = vsmask.f32 7424
      %v743 = vrot.slane %v472, 1
      %v744 = vor.u32 %v469, %v743
      %v745 = vrot.slane %v479, 1
      %v746 = vsel %vm742, %v744, %v745
      %v747 = vor.u32 %v476, %v745
      %v748 = vrot.slane %v487, 1
      %v749 = vor.u32 %v484, %v748
      %v750 = vrot.slane %v494, 1
      %v751 = vsel %vm742, %v749, %v750
      %v752 = vor.u32 %v491, %v750
      %v753 = vrot.slane %v502, 1
      %v754 = vor.u32 %v499, %v753
      %v755 = vrot.slane %v509, 1
      %v756 = vsel %vm742, %v754, %v755
      %v757 = vor.u32 %v506, %v755
      %v758 = vrot.slane %v517, 1
      %v759 = vor.u32 %v514, %v758
      %v760 = vrot.slane %v524, 1
      %v761 = vsel %vm742, %v759, %v760
      %v762 = vor.u32 %v521, %v760
      %v763 = vrot.slane %v532, 1
      %v764 = vor.u32 %v529, %v763
      %v765 = vrot.slane %v539, 1
      %v766 = vsel %vm742, %v764, %v765
      %v767 = vor.u32 %v536, %v765
      %v768 = vrot.slane %v547, 1
      %v769 = vor.u32 %v544, %v768
      %v770 = vrot.slane %v554, 1
      %v771 = vsel %vm742, %v769, %v770
      %v772 = vor.u32 %v551, %v770
      %v773 = vrot.slane %v562, 1
      %v774 = vor.u32 %v559, %v773
      %v775 = vrot.slane %v569, 1
      %v776 = vsel %vm742, %v774, %v775
      %v777 = vor.u32 %v566, %v775
      %v778 = vrot.slane %v577, 1
      %v779 = vor.u32 %v574, %v778
      %v780 = vrot.slane %v584, 1
      %v781 = vsel %vm742, %v779, %v780
      %v782 = vor.u32 %v581, %v780
      %v783 = vrot.slane %v592, 1
      %v784 = vor.u32 %v589, %v783
      %v785 = vrot.slane %v599, 1
      %v786 = vsel %vm742, %v784, %v785
      %v787 = vor.u32 %v596, %v785
      %v788 = vrot.slane %v607, 1
      %v789 = vor.u32 %v604, %v788
      %v790 = vrot.slane %v614, 1
      %v791 = vsel %vm742, %v789, %v790
      %v792 = vor.u32 %v611, %v790
      %v793 = vrot.slane %v622, 1
      %v794 = vor.u32 %v619, %v793
      %v795 = vrot.slane %v629, 1
      %v796 = vsel %vm742, %v794, %v795
      %v797 = vor.u32 %v626, %v795
      %v798 = vrot.slane %v637, 1
      %v799 = vor.u32 %v634, %v798
      %v800 = vrot.slane %v644, 1
      %v801 = vsel %vm742, %v799, %v800
      %v802 = vor.u32 %v641, %v800
      %v803 = vrot.slane %v652, 1
      %v804 = vor.u32 %v649, %v803
      %v805 = vrot.slane %v659, 1
      %v806 = vsel %vm742, %v804, %v805
      %v807 = vor.u32 %v656, %v805
      %v808 = vrot.slane %v667, 1
      %v809 = vor.u32 %v664, %v808
      %v810 = vrot.slane %v674, 1
      %v811 = vsel %vm742, %v809, %v810
      %v812 = vor.u32 %v671, %v810
      %v813 = vrot.slane %v682, 1
      %v814 = vor.u32 %v679, %v813
      %v815 = vrot.slane %v689, 1
      %v816 = vsel %vm742, %v814, %v815
      %v817 = vor.u32 %v686, %v815
      %v818 = vrot.slane %v697, 1
      %v819 = vor.u32 %v694, %v818
      %v820 = vrot.slane %v704, 1
      %v821 = vsel %vm742, %v819, %v820
      %v822 = vor.u32 %v701, %v820
      %vm839 = vcmask 1047552
      %vm840 = vmand %vm839, %vm742
      %v841 = vsel %vm840, %v747, 0
      %v842 = vsel %vm840, %v752, 0
      %v843 = vsel %vm840, %v757, 0
      %v844 = vsel %vm840, %v762, 0
      %v845 = vsel %vm840, %v767, 0
      %v846 = vsel %vm840, %v772, 0
      %v847 = vsel %vm840, %v777, 0
      %v848 = vsel %vm840, %v782, 0
      %v849 = vsel %vm840, %v787, 0
      %v850 = vsel %vm840, %v792, 0
      %v851 = vsel %vm840, %v797, 0
      %v852 = vsel %vm840, %v802, 0
      %v853 = vsel %vm840, %v807, 0
      %v854 = vsel %vm840, %v812, 0
      %v855 = vsel %vm840, %v817, 0
      %v856 = vsel %vm840, %v822, 0
      %857 = vrot.lane.b32.xlu0 %v435, 8
      %v858 = vpop.permute.xlu0 %857
      %859 = vrot.lane.b32.xlu0 %v436, 8
      %v860 = vpop.permute.xlu0 %859
      %861 = vrot.lane.b32.xlu0 %v437, 8
      %v862 = vpop.permute.xlu0 %861
      %863 = vrot.lane.b32.xlu0 %v438, 8
      %v864 = vpop.permute.xlu0 %863
      %865 = vrot.lane.b32.xlu0 %v439, 8
      %v866 = vpop.permute.xlu0 %865
      %867 = vrot.lane.b32.xlu0 %v440, 8
      %v868 = vpop.permute.xlu0 %867
      %869 = vrot.lane.b32.xlu0 %v441, 8
      %v870 = vpop.permute.xlu0 %869
      %871 = vrot.lane.b32.xlu0 %v442, 8
      %v872 = vpop.permute.xlu0 %871
      %873 = vrot.lane.b32.xlu0 %v443, 8
      %v874 = vpop.permute.xlu0 %873
      %875 = vrot.lane.b32.xlu0 %v444, 8
      %v876 = vpop.permute.xlu0 %875
      %877 = vrot.lane.b32.xlu0 %v445, 8
      %v878 = vpop.permute.xlu0 %877
      %879 = vrot.lane.b32.xlu0 %v446, 8
      %v880 = vpop.permute.xlu0 %879
      %881 = vrot.lane.b32.xlu0 %v447, 8
      %v882 = vpop.permute.xlu0 %881
      %883 = vrot.lane.b32.xlu0 %v448, 8
      %v884 = vpop.permute.xlu0 %883
      %885 = vrot.lane.b32.xlu0 %v449, 8
      %v886 = vpop.permute.xlu0 %885
      %887 = vrot.lane.b32.xlu0 %v450, 8
      %v888 = vpop.permute.xlu0 %887
      %889 = vrot.lane.b32.xlu0 %v451, 8
      %v890 = vpop.permute.xlu0 %889
      %891 = vrot.lane.b32.xlu0 %v452, 8
      %v892 = vpop.permute.xlu0 %891
      %893 = vrot.lane.b32.xlu0 %v453, 8
      %v894 = vpop.permute.xlu0 %893
      %895 = vrot.lane.b32.xlu0 %v454, 8
      %v896 = vpop.permute.xlu0 %895
      %897 = vrot.lane.b32.xlu0 %v455, 8
      %v898 = vpop.permute.xlu0 %897
      %899 = vrot.lane.b32.xlu0 %v456, 8
      %v900 = vpop.permute.xlu0 %899
      %901 = vrot.lane.b32.xlu0 %v457, 8
      %v902 = vpop.permute.xlu0 %901
      %903 = vrot.lane.b32.xlu0 %v458, 8
      %v904 = vpop.permute.xlu0 %903
      %905 = vrot.lane.b32.xlu0 %v459, 8
      %v906 = vpop.permute.xlu0 %905
      %907 = vrot.lane.b32.xlu0 %v460, 8
      %v908 = vpop.permute.xlu0 %907
      %909 = vrot.lane.b32.xlu0 %v461, 8
      %v910 = vpop.permute.xlu0 %909
      %911 = vrot.lane.b32.xlu0 %v462, 8
      %v912 = vpop.permute.xlu0 %911
      %913 = vrot.lane.b32.xlu0 %v463, 8
      %v914 = vpop.permute.xlu0 %913
      %915 = vrot.lane.b32.xlu0 %v464, 8
      %v916 = vpop.permute.xlu0 %915
      %917 = vrot.lane.b32.xlu0 %v465, 8
      %v918 = vpop.permute.xlu0 %917
      %919 = vrot.lane.b32.xlu0 %v466, 8
      %v920 = vpop.permute.xlu0 %919
      %937 = vrot.lane.b32.xlu0 %v746, 16
      %v938 = vpop.permute.xlu0 %937
      %939 = vrot.lane.b32.xlu0 %v841, 16
      %v940 = vpop.permute.xlu0 %939
      %941 = vrot.lane.b32.xlu0 %v751, 16
      %v942 = vpop.permute.xlu0 %941
      %943 = vrot.lane.b32.xlu0 %v842, 16
      %v944 = vpop.permute.xlu0 %943
      %945 = vrot.lane.b32.xlu0 %v756, 16
      %v946 = vpop.permute.xlu0 %945
      %947 = vrot.lane.b32.xlu0 %v843, 16
      %v948 = vpop.permute.xlu0 %947
      %949 = vrot.lane.b32.xlu0 %v761, 16
      %v950 = vpop.permute.xlu0 %949
      %951 = vrot.lane.b32.xlu0 %v844, 16
      %v952 = vpop.permute.xlu0 %951
      %953 = vrot.lane.b32.xlu0 %v766, 16
      %v954 = vpop.permute.xlu0 %953
      %955 = vrot.lane.b32.xlu0 %v845, 16
      %v956 = vpop.permute.xlu0 %955
      %957 = vrot.lane.b32.xlu0 %v771, 16
      %v958 = vpop.permute.xlu0 %957
      %959 = vrot.lane.b32.xlu0 %v846, 16
      %v960 = vpop.permute.xlu0 %959
      %961 = vrot.lane.b32.xlu0 %v776, 16
      %v962 = vpop.permute.xlu0 %961
      %963 = vrot.lane.b32.xlu0 %v847, 16
      %v964 = vpop.permute.xlu0 %963
      %965 = vrot.lane.b32.xlu0 %v781, 16
      %v966 = vpop.permute.xlu0 %965
      %967 = vrot.lane.b32.xlu0 %v848, 16
      %v968 = vpop.permute.xlu0 %967
      %969 = vrot.lane.b32.xlu0 %v786, 16
      %v970 = vpop.permute.xlu0 %969
      %971 = vrot.lane.b32.xlu0 %v849, 16
      %v972 = vpop.permute.xlu0 %971
      %973 = vrot.lane.b32.xlu0 %v791, 16
      %v974 = vpop.permute.xlu0 %973
      %975 = vrot.lane.b32.xlu0 %v850, 16
      %v976 = vpop.permute.xlu0 %975
      %977 = vrot.lane.b32.xlu0 %v796, 16
      %v978 = vpop.permute.xlu0 %977
      %979 = vrot.lane.b32.xlu0 %v851, 16
      %v980 = vpop.permute.xlu0 %979
      %981 = vrot.lane.b32.xlu0 %v801, 16
      %v982 = vpop.permute.xlu0 %981
      %983 = vrot.lane.b32.xlu0 %v852, 16
      %v984 = vpop.permute.xlu0 %983
      %985 = vrot.lane.b32.xlu0 %v806, 16
      %v986 = vpop.permute.xlu0 %985
      %987 = vrot.lane.b32.xlu0 %v853, 16
      %v988 = vpop.permute.xlu0 %987
      %989 = vrot.lane.b32.xlu0 %v811, 16
      %v990 = vpop.permute.xlu0 %989
      %991 = vrot.lane.b32.xlu0 %v854, 16
      %v992 = vpop.permute.xlu0 %991
      %993 = vrot.lane.b32.xlu0 %v816, 16
      %v994 = vpop.permute.xlu0 %993
      %995 = vrot.lane.b32.xlu0 %v855, 16
      %v996 = vpop.permute.xlu0 %995
      %997 = vrot.lane.b32.xlu0 %v821, 16
      %v998 = vpop.permute.xlu0 %997
      %999 = vrot.lane.b32.xlu0 %v856, 16
      %v1000 = vpop.permute.xlu0 %999
      %vm1001 = vcmask 64512
      %v1004 = vsel %vm1001, %v726, %v858
      %v1007 = vsel %vm1001, %v482, %v860
      %v1010 = vsel %vm1001, %v727, %v862
      %v1013 = vsel %vm1001, %v497, %v864
      %v1016 = vsel %vm1001, %v728, %v866
      %v1019 = vsel %vm1001, %v512, %v868
      %v1022 = vsel %vm1001, %v729, %v870
      %v1025 = vsel %vm1001, %v527, %v872
      %v1028 = vsel %vm1001, %v730, %v874
      %v1031 = vsel %vm1001, %v542, %v876
      %v1034 = vsel %vm1001, %v731, %v878
      %v1037 = vsel %vm1001, %v557, %v880
      %v1040 = vsel %vm1001, %v732, %v882
      %v1043 = vsel %vm1001, %v572, %v884
      %v1046 = vsel %vm1001, %v733, %v886
      %v1049 = vsel %vm1001, %v587, %v888
      %v1052 = vsel %vm1001, %v734, %v890
      %v1055 = vsel %vm1001, %v602, %v892
      %v1058 = vsel %vm1001, %v735, %v894
      %v1061 = vsel %vm1001, %v617, %v896
      %v1064 = vsel %vm1001, %v736, %v898
      %v1067 = vsel %vm1001, %v632, %v900
      %v1070 = vsel %vm1001, %v737, %v902
      %v1073 = vsel %vm1001, %v647, %v904
      %v1076 = vsel %vm1001, %v738, %v906
      %v1079 = vsel %vm1001, %v662, %v908
      %v1082 = vsel %vm1001, %v739, %v910
      %v1085 = vsel %vm1001, %v677, %v912
      %v1088 = vsel %vm1001, %v740, %v914
      %v1091 = vsel %vm1001, %v692, %v916
      %v1094 = vsel %vm1001, %v741, %v918
      %v1097 = vsel %vm1001, %v707, %v920
      %vm1098 = vcmask 130048
      %v1100 = vsel %vm1098, %v1004, %v938
      %v1102 = vsel %vm1098, %v1007, %v940
      %v1104 = vsel %vm1098, %v1010, %v942
      %v1106 = vsel %vm1098, %v1013, %v944
      %v1108 = vsel %vm1098, %v1016, %v946
      %v1110 = vsel %vm1098, %v1019, %v948
      %v1112 = vsel %vm1098, %v1022, %v950
      %v1114 = vsel %vm1098, %v1025, %v952
      %v1116 = vsel %vm1098, %v1028, %v954
      %v1118 = vsel %vm1098, %v1031, %v956
      %v1120 = vsel %vm1098, %v1034, %v958
      %v1122 = vsel %vm1098, %v1037, %v960
      %v1124 = vsel %vm1098, %v1040, %v962
      %v1126 = vsel %vm1098, %v1043, %v964
      %v1128 = vsel %vm1098, %v1046, %v966
      %v1130 = vsel %vm1098, %v1049, %v968
      %v1132 = vsel %vm1098, %v1052, %v970
      %v1134 = vsel %vm1098, %v1055, %v972
      %v1136 = vsel %vm1098, %v1058, %v974
      %v1138 = vsel %vm1098, %v1061, %v976
      %v1140 = vsel %vm1098, %v1064, %v978
      %v1142 = vsel %vm1098, %v1067, %v980
      %v1144 = vsel %vm1098, %v1070, %v982
      %v1146 = vsel %vm1098, %v1073, %v984
      %v1148 = vsel %vm1098, %v1076, %v986
      %v1150 = vsel %vm1098, %v1079, %v988
      %v1152 = vsel %vm1098, %v1082, %v990
      %v1154 = vsel %vm1098, %v1085, %v992
      %v1156 = vsel %vm1098, %v1088, %v994
      %v1158 = vsel %vm1098, %v1091, %v996
      %v1160 = vsel %vm1098, %v1094, %v998
      %v1162 = vsel %vm1098, %v1097, %v1000
      %v1163 = vld [vmem:[%s1] sm:$0xf]
      %v1164 = vld [vmem:[%s1 + $0x4] sm:$0xf]
      %v1165 = vld [vmem:[%s1 + $0x8] sm:$0xf]
      %v1169 = vunpack.c.l.b16 %v1163
      %v1170 = vunpack.c.l.b16 %v1164
      %v1171 = vunpack.c.l.b16 %v1165
      %v1172 = vpack.c.b16 %v1170, %v1169
      %v1173 = vpack.c.b16 %v1171, %v1171
      %vm1175 = vcmask 195584
      %v1176 = vsel %vm1175, %v1100, 0
      %v1178 = vsel %vm1175, %v1102, 0
      %v1180 = vsel %vm1175, %v1104, 0
      %v1182 = vsel %vm1175, %v1106, 0
      %v1184 = vsel %vm1175, %v1108, 0
      %v1186 = vsel %vm1175, %v1110, 0
      %v1188 = vsel %vm1175, %v1112, 0
      %v1190 = vsel %vm1175, %v1114, 0
      %v1192 = vsel %vm1175, %v1116, 0
      %v1194 = vsel %vm1175, %v1118, 0
      %v1196 = vsel %vm1175, %v1120, 0
      %v1198 = vsel %vm1175, %v1122, 0
      %v1200 = vsel %vm1175, %v1124, 0
      %v1202 = vsel %vm1175, %v1126, 0
      %v1204 = vsel %vm1175, %v1128, 0
      %v1206 = vsel %vm1175, %v1130, 0
      %v1208 = vsel %vm1175, %v1132, 0
      %v1210 = vsel %vm1175, %v1134, 0
      %v1212 = vsel %vm1175, %v1136, 0
      %v1214 = vsel %vm1175, %v1138, 0
      %v1216 = vsel %vm1175, %v1140, 0
      %v1218 = vsel %vm1175, %v1142, 0
      %v1220 = vsel %vm1175, %v1144, 0
      %v1222 = vsel %vm1175, %v1146, 0
      %v1224 = vsel %vm1175, %v1148, 0
      %v1226 = vsel %vm1175, %v1150, 0
      %v1228 = vsel %vm1175, %v1152, 0
      %v1230 = vsel %vm1175, %v1154, 0
      %v1232 = vsel %vm1175, %v1156, 0
      %v1234 = vsel %vm1175, %v1158, 0
      %v1236 = vsel %vm1175, %v1160, 0
      %v1238 = vsel %vm1175, %v1162, 0
      %vm1240 = vcmask 1043456
      %v1242 = vsel %vm1240, %v1173, 0
      %1244 = vmatprep.subr.bf16.mxu0 0
      %1245 = vmatpush1.bf16.msra.mxu0 %v1172
      %1246 = vmatprep.subr.bf16.mxu0 0
      %1247 = vmatpush1.bf16.msra.mxu0 %v1242
      %1248 = vmatprep.subr.bf16.mxu0 0
      %1249 = vmatpush1.bf16.msra.mxu0 0
      %1250 = vmatprep.subr.bf16.mxu0 0
      %1251 = vmatpush1.bf16.msra.mxu0 0
      %1252 = vmatprep.subr.bf16.mxu0 0
      %1253 = vmatpush1.bf16.msra.mxu0 0
      %1254 = vmatprep.subr.bf16.mxu0 0
      %1255 = vmatpush1.bf16.msra.mxu0 0
      %1256 = vmatprep.subr.bf16.mxu0 0
      %1257 = vmatpush1.bf16.msra.mxu0 0
      %1258 = vmatprep.subr.bf16.mxu0 0
      %1259 = vmatpush1.bf16.msra.mxu0 0
      %1260 = vmatprep.subr.bf16.mxu0 0
      %1261 = vmatpush1.bf16.msra.mxu0 0
      %1262 = vmatprep.subr.bf16.mxu0 0
      %1263 = vmatpush1.bf16.msra.mxu0 0
      %1264 = vmatprep.subr.bf16.mxu0 0
      %1265 = vmatpush1.bf16.msra.mxu0 0
      %1266 = vmatprep.subr.bf16.mxu0 0
      %1267 = vmatpush1.bf16.msra.mxu0 0
      %1268 = vmatprep.subr.bf16.mxu0 0
      %1269 = vmatpush1.bf16.msra.mxu0 0
      %1270 = vmatprep.subr.bf16.mxu0 0
      %1271 = vmatpush1.bf16.msra.mxu0 0
      %1272 = vmatprep.subr.bf16.mxu0 0
      %1273 = vmatpush1.bf16.msra.mxu0 0
      %1274 = vmatprep.subr.bf16.mxu0 0
      %1275 = vmatpush1.bf16.msra.mxu0 0
      %1276 = vmatprep.mubr.bf16.mxu0 0
      %1277 = vmatmul.mubr.bf16.gmra.mrb[0].mxu0 %v1176
      %v1278 = vpop.f32.mrb[0].mxu0
      %v1279 = vadd.f32 0.0, %v1278
      %v1280 = vpop.f32.mrb[0].mxu0
      %v1281 = vpop.f32.mrb[0].mxu0
      %v1282 = vadd.f32 0.0, %v1281
      %v1283 = vpop.f32.mrb[0].mxu0
      %1284 = vmatprep.mubr.bf16.mxu0 0
      %1285 = vmatmul.mubr.bf16.gmra.mrb[0].mxu0 %v1178
      %v1286 = vpop.f32.mrb[0].mxu0
      %v1287 = vadd.f32 0.0, %v1286
      %v1288 = vpop.f32.mrb[0].mxu0
      %v1289 = vpop.f32.mrb[0].mxu0
      %v1290 = vadd.f32 0.0, %v1289
      %v1291 = vpop.f32.mrb[0].mxu0
      %1292 = vmatprep.mubr.bf16.mxu0 0
      %1293 = vmatmul.mubr.bf16.gmra.mrb[0].mxu0 %v1180
      %v1294 = vpop.f32.mrb[0].mxu0
      %v1295 = vadd.f32 0.0, %v1294
      %v1296 = vpop.f32.mrb[0].mxu0
      %v1297 = vpop.f32.mrb[0].mxu0
      %v1298 = vadd.f32 0.0, %v1297
      %v1299 = vpop.f32.mrb[0].mxu0
      %1300 = vmatprep.mubr.bf16.mxu0 0
      %1301 = vmatmul.mubr.bf16.gmra.mrb[0].mxu0 %v1182
      %v1302 = vpop.f32.mrb[0].mxu0
      %v1303 = vadd.f32 0.0, %v1302
      %v1304 = vpop.f32.mrb[0].mxu0
      %v1305 = vpop.f32.mrb[0].mxu0
      %v1306 = vadd.f32 0.0, %v1305
      %v1307 = vpop.f32.mrb[0].mxu0
      %1308 = vmatprep.mubr.bf16.mxu0 0
      %1309 = vmatmul.mubr.bf16.gmra.mrb[0].mxu0 %v1184
      %v1310 = vpop.f32.mrb[0].mxu0
      %v1311 = vadd.f32 0.0, %v1310
      %v1312 = vpop.f32.mrb[0].mxu0
      %v1313 = vpop.f32.mrb[0].mxu0
      %v1314 = vadd.f32 0.0, %v1313
      %v1315 = vpop.f32.mrb[0].mxu0
      %1316 = vmatprep.mubr.bf16.mxu0 0
      %1317 = vmatmul.mubr.bf16.gmra.mrb[0].mxu0 %v1186
      %v1318 = vpop.f32.mrb[0].mxu0
      %v1319 = vadd.f32 0.0, %v1318
      %v1320 = vpop.f32.mrb[0].mxu0
      %v1321 = vpop.f32.mrb[0].mxu0
      %v1322 = vadd.f32 0.0, %v1321
      %v1323 = vpop.f32.mrb[0].mxu0
      %1324 = vmatprep.mubr.bf16.mxu0 0
      %1325 = vmatmul.mubr.bf16.gmra.mrb[0].mxu0 %v1188
      %v1326 = vpop.f32.mrb[0].mxu0
      %v1327 = vadd.f32 0.0, %v1326
      %v1328 = vpop.f32.mrb[0].mxu0
      %v1329 = vpop.f32.mrb[0].mxu0
      %v1330 = vadd.f32 0.0, %v1329
      %v1331 = vpop.f32.mrb[0].mxu0
      %1332 = vmatprep.mubr.bf16.mxu0 0
      %1333 = vmatmul.mubr.bf16.gmra.mrb[0].mxu0 %v1190
      %v1334 = vpop.f32.mrb[0].mxu0
      %v1335 = vadd.f32 0.0, %v1334
      %v1336 = vpop.f32.mrb[0].mxu0
      %v1337 = vpop.f32.mrb[0].mxu0
      %v1338 = vadd.f32 0.0, %v1337
      %v1339 = vpop.f32.mrb[0].mxu0
      %1340 = vmatprep.mubr.bf16.mxu0 0
      %1341 = vmatmul.mubr.bf16.gmra.mrb[0].mxu0 %v1192
      %v1342 = vpop.f32.mrb[0].mxu0
      %v1343 = vadd.f32 0.0, %v1342
      %v1344 = vpop.f32.mrb[0].mxu0
      %v1345 = vpop.f32.mrb[0].mxu0
      %v1346 = vadd.f32 0.0, %v1345
      %v1347 = vpop.f32.mrb[0].mxu0
      %1348 = vmatprep.mubr.bf16.mxu0 0
      %1349 = vmatmul.mubr.bf16.gmra.mrb[0].mxu0 %v1194
      %v1350 = vpop.f32.mrb[0].mxu0
      %v1351 = vadd.f32 0.0, %v1350
      %v1352 = vpop.f32.mrb[0].mxu0
      %v1353 = vpop.f32.mrb[0].mxu0
      %v1354 = vadd.f32 0.0, %v1353
      %v1355 = vpop.f32.mrb[0].mxu0
      %1356 = vmatprep.mubr.bf16.mxu0 0
      %1357 = vmatmul.mubr.bf16.gmra.mrb[0].mxu0 %v1196
      %v1358 = vpop.f32.mrb[0].mxu0
      %v1359 = vadd.f32 0.0, %v1358
      %v1360 = vpop.f32.mrb[0].mxu0
      %v1361 = vpop.f32.mrb[0].mxu0
      %v1362 = vadd.f32 0.0, %v1361
      %v1363 = vpop.f32.mrb[0].mxu0
      %1364 = vmatprep.mubr.bf16.mxu0 0
      %1365 = vmatmul.mubr.bf16.gmra.mrb[0].mxu0 %v1198
      %v1366 = vpop.f32.mrb[0].mxu0
      %v1367 = vadd.f32 0.0, %v1366
      %v1368 = vpop.f32.mrb[0].mxu0
      %v1369 = vpop.f32.mrb[0].mxu0
      %v1370 = vadd.f32 0.0, %v1369
      %v1371 = vpop.f32.mrb[0].mxu0
      %1372 = vmatprep.mubr.bf16.mxu0 0
      %1373 = vmatmul.mubr.bf16.gmra.mrb[0].mxu0 %v1200
      %v1374 = vpop.f32.mrb[0].mxu0
      %v1375 = vadd.f32 0.0, %v1374
      %v1376 = vpop.f32.mrb[0].mxu0
      %v1377 = vpop.f32.mrb[0].mxu0
      %v1378 = vadd.f32 0.0, %v1377
      %v1379 = vpop.f32.mrb[0].mxu0
      %1380 = vmatprep.mubr.bf16.mxu0 0
      %1381 = vmatmul.mubr.bf16.gmra.mrb[0].mxu0 %v1202
      %v1382 = vpop.f32.mrb[0].mxu0
      %v1383 = vadd.f32 0.0, %v1382
      %v1384 = vpop.f32.mrb[0].mxu0
      %v1385 = vpop.f32.mrb[0].mxu0
      %v1386 = vadd.f32 0.0, %v1385
      %v1387 = vpop.f32.mrb[0].mxu0
      %1388 = vmatprep.mubr.bf16.mxu0 0
      %1389 = vmatmul.mubr.bf16.gmra.mrb[0].mxu0 %v1204
      %v1390 = vpop.f32.mrb[0].mxu0
      %v1391 = vadd.f32 0.0, %v1390
      %v1392 = vpop.f32.mrb[0].mxu0
      %v1393 = vpop.f32.mrb[0].mxu0
      %v1394 = vadd.f32 0.0, %v1393
      %v1395 = vpop.f32.mrb[0].mxu0
      %1396 = vmatprep.mubr.bf16.mxu0 0
      %1397 = vmatmul.mubr.bf16.gmra.mrb[0].mxu0 %v1206
      %v1398 = vpop.f32.mrb[0].mxu0
      %v1399 = vadd.f32 0.0, %v1398
      %v1400 = vpop.f32.mrb[0].mxu0
      %v1401 = vpop.f32.mrb[0].mxu0
      %v1402 = vadd.f32 0.0, %v1401
      %v1403 = vpop.f32.mrb[0].mxu0
      %1404 = vmatprep.mubr.bf16.mxu0 0
      %1405 = vmatmul.mubr.bf16.gmra.mrb[0].mxu0 %v1208
      %v1406 = vpop.f32.mrb[0].mxu0
      %v1407 = vadd.f32 0.0, %v1406
      %v1408 = vpop.f32.mrb[0].mxu0
      %v1409 = vpop.f32.mrb[0].mxu0
      %v1410 = vadd.f32 0.0, %v1409
      %v1411 = vpop.f32.mrb[0].mxu0
      %1412 = vmatprep.mubr.bf16.mxu0 0
      %1413 = vmatmul.mubr.bf16.gmra.mrb[0].mxu0 %v1210
      %v1414 = vpop.f32.mrb[0].mxu0
      %v1415 = vadd.f32 0.0, %v1414
      %v1416 = vpop.f32.mrb[0].mxu0
      %v1417 = vpop.f32.mrb[0].mxu0
      %v1418 = vadd.f32 0.0, %v1417
      %v1419 = vpop.f32.mrb[0].mxu0
      %1420 = vmatprep.mubr.bf16.mxu0 0
      %1421 = vmatmul.mubr.bf16.gmra.mrb[0].mxu0 %v1212
      %v1422 = vpop.f32.mrb[0].mxu0
      %v1423 = vadd.f32 0.0, %v1422
      %v1424 = vpop.f32.mrb[0].mxu0
      %v1425 = vpop.f32.mrb[0].mxu0
      %v1426 = vadd.f32 0.0, %v1425
      %v1427 = vpop.f32.mrb[0].mxu0
      %1428 = vmatprep.mubr.bf16.mxu0 0
      %1429 = vmatmul.mubr.bf16.gmra.mrb[0].mxu0 %v1214
      %v1430 = vpop.f32.mrb[0].mxu0
      %v1431 = vadd.f32 0.0, %v1430
      %v1432 = vpop.f32.mrb[0].mxu0
      %v1433 = vpop.f32.mrb[0].mxu0
      %v1434 = vadd.f32 0.0, %v1433
      %v1435 = vpop.f32.mrb[0].mxu0
      %1436 = vmatprep.mubr.bf16.mxu0 0
      %1437 = vmatmul.mubr.bf16.gmra.mrb[0].mxu0 %v1216
      %v1438 = vpop.f32.mrb[0].mxu0
      %v1439 = vadd.f32 0.0, %v1438
      %v1440 = vpop.f32.mrb[0].mxu0
      %v1441 = vpop.f32.mrb[0].mxu0
      %v1442 = vadd.f32 0.0, %v1441
      %v1443 = vpop.f32.mrb[0].mxu0
      %1444 = vmatprep.mubr.bf16.mxu0 0
      %1445 = vmatmul.mubr.bf16.gmra.mrb[0].mxu0 %v1218
      %v1446 = vpop.f32.mrb[0].mxu0
      %v1447 = vadd.f32 0.0, %v1446
      %v1448 = vpop.f32.mrb[0].mxu0
      %v1449 = vpop.f32.mrb[0].mxu0
      %v1450 = vadd.f32 0.0, %v1449
      %v1451 = vpop.f32.mrb[0].mxu0
      %1452 = vmatprep.mubr.bf16.mxu0 0
      %1453 = vmatmul.mubr.bf16.gmra.mrb[0].mxu0 %v1220
      %v1454 = vpop.f32.mrb[0].mxu0
      %v1455 = vadd.f32 0.0, %v1454
      %v1456 = vpop.f32.mrb[0].mxu0
      %v1457 = vpop.f32.mrb[0].mxu0
      %v1458 = vadd.f32 0.0, %v1457
      %v1459 = vpop.f32.mrb[0].mxu0
      %1460 = vmatprep.mubr.bf16.mxu0 0
      %1461 = vmatmul.mubr.bf16.gmra.mrb[0].mxu0 %v1222
      %v1462 = vpop.f32.mrb[0].mxu0
      %v1463 = vadd.f32 0.0, %v1462
      %v1464 = vpop.f32.mrb[0].mxu0
      %v1465 = vpop.f32.mrb[0].mxu0
      %v1466 = vadd.f32 0.0, %v1465
      %v1467 = vpop.f32.mrb[0].mxu0
      %1468 = vmatprep.mubr.bf16.mxu0 0
      %1469 = vmatmul.mubr.bf16.gmra.mrb[0].mxu0 %v1224
      %v1470 = vpop.f32.mrb[0].mxu0
      %v1471 = vadd.f32 0.0, %v1470
      %v1472 = vpop.f32.mrb[0].mxu0
      %v1473 = vpop.f32.mrb[0].mxu0
      %v1474 = vadd.f32 0.0, %v1473
      %v1475 = vpop.f32.mrb[0].mxu0
      %1476 = vmatprep.mubr.bf16.mxu0 0
      %1477 = vmatmul.mubr.bf16.gmra.mrb[0].mxu0 %v1226
      %v1478 = vpop.f32.mrb[0].mxu0
      %v1479 = vadd.f32 0.0, %v1478
      %v1480 = vpop.f32.mrb[0].mxu0
      %v1481 = vpop.f32.mrb[0].mxu0
      %v1482 = vadd.f32 0.0, %v1481
      %v1483 = vpop.f32.mrb[0].mxu0
      %1484 = vmatprep.mubr.bf16.mxu0 0
      %1485 = vmatmul.mubr.bf16.gmra.mrb[0].mxu0 %v1228
      %v1486 = vpop.f32.mrb[0].mxu0
      %v1487 = vadd.f32 0.0, %v1486
      %v1488 = vpop.f32.mrb[0].mxu0
      %v1489 = vpop.f32.mrb[0].mxu0
      %v1490 = vadd.f32 0.0, %v1489
      %v1491 = vpop.f32.mrb[0].mxu0
      %1492 = vmatprep.mubr.bf16.mxu0 0
      %1493 = vmatmul.mubr.bf16.gmra.mrb[0].mxu0 %v1230
      %v1494 = vpop.f32.mrb[0].mxu0
      %v1495 = vadd.f32 0.0, %v1494
      %v1496 = vpop.f32.mrb[0].mxu0
      %v1497 = vpop.f32.mrb[0].mxu0
      %v1498 = vadd.f32 0.0, %v1497
      %v1499 = vpop.f32.mrb[0].mxu0
      %1500 = vmatprep.mubr.bf16.mxu0 0
      %1501 = vmatmul.mubr.bf16.gmra.mrb[0].mxu0 %v1232
      %v1502 = vpop.f32.mrb[0].mxu0
      %v1503 = vadd.f32 0.0, %v1502
      %v1504 = vpop.f32.mrb[0].mxu0
      %v1505 = vpop.f32.mrb[0].mxu0
      %v1506 = vadd.f32 0.0, %v1505
      %v1507 = vpop.f32.mrb[0].mxu0
      %1508 = vmatprep.mubr.bf16.mxu0 0
      %1509 = vmatmul.mubr.bf16.gmra.mrb[0].mxu0 %v1234
      %v1510 = vpop.f32.mrb[0].mxu0
      %v1511 = vadd.f32 0.0, %v1510
      %v1512 = vpop.f32.mrb[0].mxu0
      %v1513 = vpop.f32.mrb[0].mxu0
      %v1514 = vadd.f32 0.0, %v1513
      %v1515 = vpop.f32.mrb[0].mxu0
      %1516 = vmatprep.mubr.bf16.mxu0 0
      %1517 = vmatmul.mubr.bf16.gmra.mrb[0].mxu0 %v1236
      %v1518 = vpop.f32.mrb[0].mxu0
      %v1519 = vadd.f32 0.0, %v1518
      %v1520 = vpop.f32.mrb[0].mxu0
      %v1521 = vpop.f32.mrb[0].mxu0
      %v1522 = vadd.f32 0.0, %v1521
      %v1523 = vpop.f32.mrb[0].mxu0
      %1524 = vmatprep.mubr.bf16.mxu0 0
      %1525 = vmatmul.mubr.bf16.gmra.mrb[0].mxu0 %v1238
      %v1526 = vpop.f32.mrb[0].mxu0
      %v1527 = vadd.f32 0.0, %v1526
      %v1528 = vpop.f32.mrb[0].mxu0
      %v1529 = vpop.f32.mrb[0].mxu0
      %v1530 = vadd.f32 0.0, %v1529
      %v1531 = vpop.f32.mrb[0].mxu0
      %1532 = vdwg.mxu0
      %v1533 = vld [vmem:[%s2] sm:$0x1]
      %v1535 = vlaneseq
      %v1536 = vshrl.u32 %v1535, 7
      %v1537 = vsub.s32 0, %v1536
      %v1538 = vrot.slane %v1533, %v1537
      %v1540 = vmul.f32 %v1279, %v1538
      %v1541 = vmul.f32 %v1282, %v1538
      %v1542 = vmul.f32 %v1287, %v1538
      %v1543 = vmul.f32 %v1290, %v1538
      %v1544 = vmul.f32 %v1295, %v1538
      %v1545 = vmul.f32 %v1298, %v1538
      %v1546 = vmul.f32 %v1303, %v1538
      %v1547 = vmul.f32 %v1306, %v1538
      %v1548 = vmul.f32 %v1311, %v1538
      %v1549 = vmul.f32 %v1314, %v1538
      %v1550 = vmul.f32 %v1319, %v1538
      %v1551 = vmul.f32 %v1322, %v1538
      %v1552 = vmul.f32 %v1327, %v1538
      %v1553 = vmul.f32 %v1330, %v1538
      %v1554 = vmul.f32 %v1335, %v1538
      %v1555 = vmul.f32 %v1338, %v1538
      %v1556 = vmul.f32 %v1343, %v1538
      %v1557 = vmul.f32 %v1346, %v1538
      %v1558 = vmul.f32 %v1351, %v1538
      %v1559 = vmul.f32 %v1354, %v1538
      %v1560 = vmul.f32 %v1359, %v1538
      %v1561 = vmul.f32 %v1362, %v1538
      %v1562 = vmul.f32 %v1367, %v1538
      %v1563 = vmul.f32 %v1370, %v1538
      %v1564 = vmul.f32 %v1375, %v1538
      %v1565 = vmul.f32 %v1378, %v1538
      %v1566 = vmul.f32 %v1383, %v1538
      %v1567 = vmul.f32 %v1386, %v1538
      %v1568 = vmul.f32 %v1391, %v1538
      %v1569 = vmul.f32 %v1394, %v1538
      %v1570 = vmul.f32 %v1399, %v1538
      %v1571 = vmul.f32 %v1402, %v1538
      %v1572 = vmul.f32 %v1407, %v1538
      %v1573 = vmul.f32 %v1410, %v1538
      %v1574 = vmul.f32 %v1415, %v1538
      %v1575 = vmul.f32 %v1418, %v1538
      %v1576 = vmul.f32 %v1423, %v1538
      %v1577 = vmul.f32 %v1426, %v1538
      %v1578 = vmul.f32 %v1431, %v1538
      %v1579 = vmul.f32 %v1434, %v1538
      %v1580 = vmul.f32 %v1439, %v1538
      %v1581 = vmul.f32 %v1442, %v1538
      %v1582 = vmul.f32 %v1447, %v1538
      %v1583 = vmul.f32 %v1450, %v1538
      %v1584 = vmul.f32 %v1455, %v1538
      %v1585 = vmul.f32 %v1458, %v1538
      %v1586 = vmul.f32 %v1463, %v1538
      %v1587 = vmul.f32 %v1466, %v1538
      %v1588 = vmul.f32 %v1471, %v1538
      %v1589 = vmul.f32 %v1474, %v1538
      %v1590 = vmul.f32 %v1479, %v1538
      %v1591 = vmul.f32 %v1482, %v1538
      %v1592 = vmul.f32 %v1487, %v1538
      %v1593 = vmul.f32 %v1490, %v1538
      %v1594 = vmul.f32 %v1495, %v1538
      %v1595 = vmul.f32 %v1498, %v1538
      %v1596 = vmul.f32 %v1503, %v1538
      %v1597 = vmul.f32 %v1506, %v1538
      %v1598 = vmul.f32 %v1511, %v1538
      %v1599 = vmul.f32 %v1514, %v1538
      %v1600 = vmul.f32 %v1519, %v1538
      %v1601 = vmul.f32 %v1522, %v1538
      %v1602 = vmul.f32 %v1527, %v1538
      %v1603 = vmul.f32 %v1530, %v1538
      %v1604 = vld [vmem:[%s3] sm:$0x1]
      %v1606 = vlaneseq
      %v1607 = vshrl.u32 %v1606, 7
      %v1608 = vsub.s32 0, %v1607
      %v1609 = vrot.slane %v1604, %v1608
      %v1611 = vadd.f32 %v1540, %v1609
      %v1612 = vadd.f32 %v1541, %v1609
      %v1613 = vadd.f32 %v1542, %v1609
      %v1614 = vadd.f32 %v1543, %v1609
      %v1615 = vadd.f32 %v1544, %v1609
      %v1616 = vadd.f32 %v1545, %v1609
      %v1617 = vadd.f32 %v1546, %v1609
      %v1618 = vadd.f32 %v1547, %v1609
      %v1619 = vadd.f32 %v1548, %v1609
      %v1620 = vadd.f32 %v1549, %v1609
      %v1621 = vadd.f32 %v1550, %v1609
      %v1622 = vadd.f32 %v1551, %v1609
      %v1623 = vadd.f32 %v1552, %v1609
      %v1624 = vadd.f32 %v1553, %v1609
      %v1625 = vadd.f32 %v1554, %v1609
      %v1626 = vadd.f32 %v1555, %v1609
      %v1627 = vadd.f32 %v1556, %v1609
      %v1628 = vadd.f32 %v1557, %v1609
      %v1629 = vadd.f32 %v1558, %v1609
      %v1630 = vadd.f32 %v1559, %v1609
      %v1631 = vadd.f32 %v1560, %v1609
      %v1632 = vadd.f32 %v1561, %v1609
      %v1633 = vadd.f32 %v1562, %v1609
      %v1634 = vadd.f32 %v1563, %v1609
      %v1635 = vadd.f32 %v1564, %v1609
      %v1636 = vadd.f32 %v1565, %v1609
      %v1637 = vadd.f32 %v1566, %v1609
      %v1638 = vadd.f32 %v1567, %v1609
      %v1639 = vadd.f32 %v1568, %v1609
      %v1640 = vadd.f32 %v1569, %v1609
      %v1641 = vadd.f32 %v1570, %v1609
      %v1642 = vadd.f32 %v1571, %v1609
      %v1643 = vadd.f32 %v1572, %v1609
      %v1644 = vadd.f32 %v1573, %v1609
      %v1645 = vadd.f32 %v1574, %v1609
      %v1646 = vadd.f32 %v1575, %v1609
      %v1647 = vadd.f32 %v1576, %v1609
      %v1648 = vadd.f32 %v1577, %v1609
      %v1649 = vadd.f32 %v1578, %v1609
      %v1650 = vadd.f32 %v1579, %v1609
      %v1651 = vadd.f32 %v1580, %v1609
      %v1652 = vadd.f32 %v1581, %v1609
      %v1653 = vadd.f32 %v1582, %v1609
      %v1654 = vadd.f32 %v1583, %v1609
      %v1655 = vadd.f32 %v1584, %v1609
      %v1656 = vadd.f32 %v1585, %v1609
      %v1657 = vadd.f32 %v1586, %v1609
      %v1658 = vadd.f32 %v1587, %v1609
      %v1659 = vadd.f32 %v1588, %v1609
      %v1660 = vadd.f32 %v1589, %v1609
      %v1661 = vadd.f32 %v1590, %v1609
      %v1662 = vadd.f32 %v1591, %v1609
      %v1663 = vadd.f32 %v1592, %v1609
      %v1664 = vadd.f32 %v1593, %v1609
      %v1665 = vadd.f32 %v1594, %v1609
      %v1666 = vadd.f32 %v1595, %v1609
      %v1667 = vadd.f32 %v1596, %v1609
      %v1668 = vadd.f32 %v1597, %v1609
      %v1669 = vadd.f32 %v1598, %v1609
      %v1670 = vadd.f32 %v1599, %v1609
      %v1671 = vadd.f32 %v1600, %v1609
      %v1672 = vadd.f32 %v1601, %v1609
      %v1673 = vadd.f32 %v1602, %v1609
      %v1674 = vadd.f32 %v1603, %v1609
      %v1675 = vmax.f32 %v1611, 0.0
      %v1676 = vmax.f32 %v1612, 0.0
      %v1677 = vmax.f32 %v1613, 0.0
      %v1678 = vmax.f32 %v1614, 0.0
      %v1679 = vmax.f32 %v1615, 0.0
      %v1680 = vmax.f32 %v1616, 0.0
      %v1681 = vmax.f32 %v1617, 0.0
      %v1682 = vmax.f32 %v1618, 0.0
      %v1683 = vmax.f32 %v1619, 0.0
      %v1684 = vmax.f32 %v1620, 0.0
      %v1685 = vmax.f32 %v1621, 0.0
      %v1686 = vmax.f32 %v1622, 0.0
      %v1687 = vmax.f32 %v1623, 0.0
      %v1688 = vmax.f32 %v1624, 0.0
      %v1689 = vmax.f32 %v1625, 0.0
      %v1690 = vmax.f32 %v1626, 0.0
      %v1691 = vmax.f32 %v1627, 0.0
      %v1692 = vmax.f32 %v1628, 0.0
      %v1693 = vmax.f32 %v1629, 0.0
      %v1694 = vmax.f32 %v1630, 0.0
      %v1695 = vmax.f32 %v1631, 0.0
      %v1696 = vmax.f32 %v1632, 0.0
      %v1697 = vmax.f32 %v1633, 0.0
      %v1698 = vmax.f32 %v1634, 0.0
      %v1699 = vmax.f32 %v1635, 0.0
      %v1700 = vmax.f32 %v1636, 0.0
      %v1701 = vmax.f32 %v1637, 0.0
      %v1702 = vmax.f32 %v1638, 0.0
      %v1703 = vmax.f32 %v1639, 0.0
      %v1704 = vmax.f32 %v1640, 0.0
      %v1705 = vmax.f32 %v1641, 0.0
      %v1706 = vmax.f32 %v1642, 0.0
      %v1707 = vmax.f32 %v1643, 0.0
      %v1708 = vmax.f32 %v1644, 0.0
      %v1709 = vmax.f32 %v1645, 0.0
      %v1710 = vmax.f32 %v1646, 0.0
      %v1711 = vmax.f32 %v1647, 0.0
      %v1712 = vmax.f32 %v1648, 0.0
      %v1713 = vmax.f32 %v1649, 0.0
      %v1714 = vmax.f32 %v1650, 0.0
      %v1715 = vmax.f32 %v1651, 0.0
      %v1716 = vmax.f32 %v1652, 0.0
      %v1717 = vmax.f32 %v1653, 0.0
      %v1718 = vmax.f32 %v1654, 0.0
      %v1719 = vmax.f32 %v1655, 0.0
      %v1720 = vmax.f32 %v1656, 0.0
      %v1721 = vmax.f32 %v1657, 0.0
      %v1722 = vmax.f32 %v1658, 0.0
      %v1723 = vmax.f32 %v1659, 0.0
      %v1724 = vmax.f32 %v1660, 0.0
      %v1725 = vmax.f32 %v1661, 0.0
      %v1726 = vmax.f32 %v1662, 0.0
      %v1727 = vmax.f32 %v1663, 0.0
      %v1728 = vmax.f32 %v1664, 0.0
      %v1729 = vmax.f32 %v1665, 0.0
      %v1730 = vmax.f32 %v1666, 0.0
      %v1731 = vmax.f32 %v1667, 0.0
      %v1732 = vmax.f32 %v1668, 0.0
      %v1733 = vmax.f32 %v1669, 0.0
      %v1734 = vmax.f32 %v1670, 0.0
      %v1735 = vmax.f32 %v1671, 0.0
      %v1736 = vmax.f32 %v1672, 0.0
      %v1737 = vmax.f32 %v1673, 0.0
      %v1738 = vmax.f32 %v1674, 0.0
      %1739 = vst.msk [vmem:[%s240] sm:$0xff] %vm1001, %v1675
      %1740 = vst.msk [vmem:[%s240 + $0x8] sm:$0xff] %vm1001, %v1676
      %1741 = vst.msk [vmem:[%s240 + $0x10] sm:$0xff] %vm1001, %v1677
      %1742 = vst.msk [vmem:[%s240 + $0x18] sm:$0xff] %vm1001, %v1678
      %1743 = vst.msk [vmem:[%s240 + $0x20] sm:$0xff] %vm1001, %v1679
      %1744 = vst.msk [vmem:[%s240 + $0x28] sm:$0xff] %vm1001, %v1680
      %1745 = vst.msk [vmem:[%s240 + $0x30] sm:$0xff] %vm1001, %v1681
      %1746 = vst.msk [vmem:[%s240 + $0x38] sm:$0xff] %vm1001, %v1682
      %1747 = vst.msk [vmem:[%s240 + $0x40] sm:$0xff] %vm1001, %v1683
      %1748 = vst.msk [vmem:[%s240 + $0x48] sm:$0xff] %vm1001, %v1684
      %1749 = vst.msk [vmem:[%s240 + $0x50] sm:$0xff] %vm1001, %v1685
      %1750 = vst.msk [vmem:[%s240 + $0x58] sm:$0xff] %vm1001, %v1686
      %1751 = vst.msk [vmem:[%s240 + $0x60] sm:$0xff] %vm1001, %v1687
      %1752 = vst.msk [vmem:[%s240 + $0x68] sm:$0xff] %vm1001, %v1688
      %1753 = vst.msk [vmem:[%s240 + $0x70] sm:$0xff] %vm1001, %v1689
      %1754 = vst.msk [vmem:[%s240 + $0x78] sm:$0xff] %vm1001, %v1690
      %1755 = vst.msk [vmem:[%s240 + $0x80] sm:$0xff] %vm1001, %v1691
      %1756 = vst.msk [vmem:[%s240 + $0x88] sm:$0xff] %vm1001, %v1692
      %1757 = vst.msk [vmem:[%s240 + $0x90] sm:$0xff] %vm1001, %v1693
      %1758 = vst.msk [vmem:[%s240 + $0x98] sm:$0xff] %vm1001, %v1694
      %1759 = vst.msk [vmem:[%s240 + $0xa0] sm:$0xff] %vm1001, %v1695
      %1760 = vst.msk [vmem:[%s240 + $0xa8] sm:$0xff] %vm1001, %v1696
      %1761 = vst.msk [vmem:[%s240 + $0xb0] sm:$0xff] %vm1001, %v1697
      %1762 = vst.msk [vmem:[%s240 + $0xb8] sm:$0xff] %vm1001, %v1698
      %1763 = vst.msk [vmem:[%s240 + $0xc0] sm:$0xff] %vm1001, %v1699
      %1764 = vst.msk [vmem:[%s240 + $0xc8] sm:$0xff] %vm1001, %v1700
      %1765 = vst.msk [vmem:[%s240 + $0xd0] sm:$0xff] %vm1001, %v1701
      %1766 = vst.msk [vmem:[%s240 + $0xd8] sm:$0xff] %vm1001, %v1702
      %1767 = vst.msk [vmem:[%s240 + $0xe0] sm:$0xff] %vm1001, %v1703
      %1768 = vst.msk [vmem:[%s240 + $0xe8] sm:$0xff] %vm1001, %v1704
      %1769 = vst.msk [vmem:[%s240 + $0xf0] sm:$0xff] %vm1001, %v1705
      %1770 = vst.msk [vmem:[%s240 + $0xf8] sm:$0xff] %vm1001, %v1706
      %1771 = vst.msk [vmem:[%s240 + $0x100] sm:$0xff] %vm1001, %v1707
      %1772 = vst.msk [vmem:[%s240 + $0x108] sm:$0xff] %vm1001, %v1708
      %1773 = vst.msk [vmem:[%s240 + $0x110] sm:$0xff] %vm1001, %v1709
      %1774 = vst.msk [vmem:[%s240 + $0x118] sm:$0xff] %vm1001, %v1710
      %1775 = vst.msk [vmem:[%s240 + $0x120] sm:$0xff] %vm1001, %v1711
      %1776 = vst.msk [vmem:[%s240 + $0x128] sm:$0xff] %vm1001, %v1712
      %1777 = vst.msk [vmem:[%s240 + $0x130] sm:$0xff] %vm1001, %v1713
      %1778 = vst.msk [vmem:[%s240 + $0x138] sm:$0xff] %vm1001, %v1714
      %1779 = vst.msk [vmem:[%s240 + $0x140] sm:$0xff] %vm1001, %v1715
      %1780 = vst.msk [vmem:[%s240 + $0x148] sm:$0xff] %vm1001, %v1716
      %1781 = vst.msk [vmem:[%s240 + $0x150] sm:$0xff] %vm1001, %v1717
      %1782 = vst.msk [vmem:[%s240 + $0x158] sm:$0xff] %vm1001, %v1718
      %1783 = vst.msk [vmem:[%s240 + $0x160] sm:$0xff] %vm1001, %v1719
      %1784 = vst.msk [vmem:[%s240 + $0x168] sm:$0xff] %vm1001, %v1720
      %1785 = vst.msk [vmem:[%s240 + $0x170] sm:$0xff] %vm1001, %v1721
      %1786 = vst.msk [vmem:[%s240 + $0x178] sm:$0xff] %vm1001, %v1722
      %1787 = vst.msk [vmem:[%s240 + $0x180] sm:$0xff] %vm1001, %v1723
      %1788 = vst.msk [vmem:[%s240 + $0x188] sm:$0xff] %vm1001, %v1724
      %1789 = vst.msk [vmem:[%s240 + $0x190] sm:$0xff] %vm1001, %v1725
      %1790 = vst.msk [vmem:[%s240 + $0x198] sm:$0xff] %vm1001, %v1726
      %1791 = vst.msk [vmem:[%s240 + $0x1a0] sm:$0xff] %vm1001, %v1727
      %1792 = vst.msk [vmem:[%s240 + $0x1a8] sm:$0xff] %vm1001, %v1728
      %1793 = vst.msk [vmem:[%s240 + $0x1b0] sm:$0xff] %vm1001, %v1729
      %1794 = vst.msk [vmem:[%s240 + $0x1b8] sm:$0xff] %vm1001, %v1730
      %1795 = vst.msk [vmem:[%s240 + $0x1c0] sm:$0xff] %vm1001, %v1731
      %1796 = vst.msk [vmem:[%s240 + $0x1c8] sm:$0xff] %vm1001, %v1732
      %1797 = vst.msk [vmem:[%s240 + $0x1d0] sm:$0xff] %vm1001, %v1733
      %1798 = vst.msk [vmem:[%s240 + $0x1d8] sm:$0xff] %vm1001, %v1734
      %1799 = vst.msk [vmem:[%s240 + $0x1e0] sm:$0xff] %vm1001, %v1735
      %1800 = vst.msk [vmem:[%s240 + $0x1e8] sm:$0xff] %vm1001, %v1736
      %1801 = vst.msk [vmem:[%s240 + $0x1f0] sm:$0xff] %vm1001, %v1737
      %1802 = vst.msk [vmem:[%s240 + $0x1f8] sm:$0xff] %vm1001, %v1738
      %s1803 = smul.u32 16, %s20
      %p1804 = scmp.lt.s32.totalorder %s19, 1
      %s1805 = scalar_select %p1804, %s19, 1
      %p1806 = scmp.lt.s32.totalorder %s1803, 15
      %s1807 = scalar_select %p1806, %s1803, 15
      %s1808 = smul.addr %s1807, 4
      %s1809 = smul.addr %s1805, 64
      %s1810 = sadd.s32 %s1808, %s1809
      %s1811 = smul.addr %s1810, 8
      %s1812 = scalar_lea.vmem %s4, %s1811
      // Predicated region
      $region37: #{upsample_forward.1} parent=35 // pred_check
        %p1813 = pneg %p138
      $region38: #{upsample_forward.1} parent=35 // pred_check_branch
        %1815 = sbr.rel (%p1813) target = $region40
      $region39: #{upsample_forward.1} parent=35 // pred_region
        %s1816 = smul.u32 16, %s20
      $region40: #{upsample_forward.1} parent=35 // pred_fallthru
        _
    $region36: #{upsample_forward.1} parent=5 // pred_fallthru
      _
    %p1817 = scmp.le.s32.totalorder 2, %s10
    // Predicated region
    $region41: #{upsample_forward.1} parent=5 // pred_check
      %p1818 = pneg %p1817
    $region42: #{upsample_forward.1} parent=5 // pred_check_branch
      %1820 = sbr.rel (%p1818) target = $region44
    $region43: #{upsample_forward.1} parent=5 // pred_region
      %s1821 = ssub.s32 %s10, 2
      // Predicated region
      $region45: #{upsample_forward.1} parent=43 // pred_check
        %p1822 = pneg %p144
      $region46: #{upsample_forward.1} parent=43 // pred_check_branch
        %1824 = sbr.rel (%p1822) target = $region48
      $region47: #{upsample_forward.1} parent=43 // pred_region
        %s1825 = smul.u32 16, %s22
        %p1826 = scmp.lt.s32.totalorder %s21, 1
        %s1827 = scalar_select %p1826, %s21, 1
        %p1828 = scmp.lt.s32.totalorder %s1825, 15
        %s1829 = scalar_select %p1828, %s1825, 15
        %s1830 = smul.addr %s1829, 4
        %s1831 = smul.addr %s1827, 64
        %s1832 = sadd.s32 %s1830, %s1831
        %s1833 = smul.addr %s1832, 8
        %s1834 = scalar_lea.vmem %s4, %s1833
      $region48: #{upsample_forward.1} parent=43 // pred_fallthru
        _
    $region44: #{upsample_forward.1} parent=5 // pred_fallthru
      _
  $region6: #{upsample_forward.1} parent=0 // loop_footer
    %s14 = sadd.s32 1, %s10
  $region7: #{upsample_forward.1} parent=0 // loop_footer_branch
    %9 = sbr.rel target = $region3
  $region8: #{upsample_forward.1} parent=0 // loop_exit
    _

</llo_original>
